<compile_context>
chip_gen: v5e
topology: v5e:2x2
jax: 0.10.0
libtpu: 0.0.40
codegen_flags: <defaults>
</compile_context>

<pallas_src>
import math

import jax
import jax.numpy as jnp
from jax.experimental import pallas as pl
from jax.experimental.pallas import tpu as pltpu


# ----------------------------------------------------------------------------
# Fused Pallas kernel: all LSTM layers + final Linear
# ----------------------------------------------------------------------------
def make_lstm_model_kernel(num_layers, T, Bp, H):
    """Build the fused kernel for a fixed (num_layers, T, padded batch, H)."""

    def kernel(*refs):
        # refs = [x, (w_ih, w_hh, bias) * L, fc_w, fc_b]  inputs
        #        [out]                                    output
        #        [gx_sc, seq_sc]                          scratch
        x_ref = refs[0]
        layer_refs = refs[1:1 + 3 * num_layers]
        fc_w_ref = refs[1 + 3 * num_layers]
        fc_b_ref = refs[2 + 3 * num_layers]
        out_ref = refs[3 + 3 * num_layers]
        gx_sc, seq_sc = refs[4 + 3 * num_layers:]

        h_last = None
        for layer in range(num_layers):
            w_ih = layer_refs[3 * layer][...]          # (d_in, 4H)
            w_hh = layer_refs[3 * layer + 1][...]      # (H,   4H)
            bias = layer_refs[3 * layer + 2][...]      # (1,   4H)  (b_ih+b_hh)
            is_last = layer == num_layers - 1

            # ---- hoisted input projection: one matmul for all timesteps ----
            seq_in = x_ref[...] if layer == 0 else seq_sc[...]   # (T, Bp, d_in)
            d_in = seq_in.shape[-1]
            gx = jnp.dot(seq_in.reshape(T * Bp, d_in), w_ih,
                         preferred_element_type=jnp.float32) + bias
            gx_sc[...] = gx.reshape(T, Bp, 4 * H)

            # ---- recurrence: only h @ W_hh + elementwise per step ----------
            # h / c are loop carries -> stay in vregs across the unrolled loop.
            def step(t, carry, w_hh=w_hh, is_last=is_last):
                h, c = carry
                gates = gx_sc[t] + jnp.dot(
                    h, w_hh, preferred_element_type=jnp.float32)   # (Bp, 4H)
                # Two whole-vreg EUP ops, then static lane slices.
                sig = jax.nn.sigmoid(gates)
                th = jnp.tanh(gates)
                # PyTorch gate order: i, f, g, o
                i_g = sig[:, 0 * H:1 * H]
                f_g = sig[:, 1 * H:2 * H]
                g_g = th[:, 2 * H:3 * H]
                o_g = sig[:, 3 * H:4 * H]
                c_n = f_g * c + i_g * g_g
                h_n = o_g * jnp.tanh(c_n)
                if not is_last:
                    # Only layers feeding a next layer materialize the sequence.
                    seq_sc[t] = h_n
                return (h_n, c_n)

            h0 = jnp.zeros((Bp, H), jnp.float32)
            c0 = jnp.zeros((Bp, H), jnp.float32)
            h_last, _ = jax.lax.fori_loop(0, T, step, (h0, c0), unroll=True)

        # ---- final Linear on the last hidden state (fused, lane-dense) -----
        out_ref[...] = (
            jnp.dot(h_last, fc_w_ref[...], preferred_element_type=jnp.float32)
            + fc_b_ref[...]
        )

    return kernel


# ----------------------------------------------------------------------------
# Wrapper
# ----------------------------------------------------------------------------
def lstm_model_forward(x_btd, params):
    """Matches LSTMModel.forward: out, _ = lstm(x); fc(out[:, -1, :])."""
    B, T, D = x_btd.shape
    num_layers = len(params["lstm_layers"])
    H = params["lstm_layers"][0][1].shape[0]
    O = params["fc_w_t"].shape[1]

    # Pad batch to a full 8-sublane tile so vregs / loads / stores are unmasked.
    Bp = max(8, ((B + 7) // 8) * 8)
    x_tbd = jnp.transpose(x_btd, (1, 0, 2)).astype(jnp.float32)   # (T, B, D)
    if Bp != B:
        x_tbd = jnp.pad(x_tbd, ((0, 0), (0, Bp - B), (0, 0)))

    # Pad the FC output dim to a full 128-lane tile -> lane-dense output store.
    Op = max(128, ((O + 127) // 128) * 128)
    fc_w = params["fc_w_t"].astype(jnp.float32)
    fc_b = params["fc_b"].astype(jnp.float32)
    if Op != O:
        fc_w = jnp.pad(fc_w, ((0, 0), (0, Op - O)))
        fc_b = jnp.pad(fc_b, ((0, 0), (0, Op - O)))

    flat_w = []
    for (w_ih_t, w_hh_t, bias) in params["lstm_layers"]:
        flat_w += [w_ih_t, w_hh_t, bias]

    n_inputs = 1 + len(flat_w) + 2
    vmem_spec = pl.BlockSpec(memory_space=pltpu.MemorySpace.VMEM)

    out = pl.pallas_call(
        make_lstm_model_kernel(num_layers, T, Bp, H),
        out_shape=jax.ShapeDtypeStruct((Bp, Op), jnp.float32),
        in_specs=[vmem_spec] * n_inputs,
        out_specs=vmem_spec,
        scratch_shapes=[
            pltpu.VMEM((T, Bp, 4 * H), jnp.float32),   # hoisted gate pre-acts
            pltpu.VMEM((T, Bp, H), jnp.float32),       # inter-layer sequence
        ],
    )(x_tbd, *flat_w, fc_w, fc_b)

    return out[:B, :O]


# ----------------------------------------------------------------------------
# Deterministic parameter init (PyTorch-style U(-1/sqrt(H), 1/sqrt(H)))
# ----------------------------------------------------------------------------
def init_params(key, input_size, hidden_size, num_layers, output_size):
    H = hidden_size
    bound = 1.0 / math.sqrt(H)
    layers = []
    for layer in range(num_layers):
        d_in = input_size if layer == 0 else H
        key, k1, k2, k3, k4 = jax.random.split(key, 5)
        w_ih = jax.random.uniform(k1, (4 * H, d_in), jnp.float32, -bound, bound)
        w_hh = jax.random.uniform(k2, (4 * H, H), jnp.float32, -bound, bound)
        b_ih = jax.random.uniform(k3, (4 * H,), jnp.float32, -bound, bound)
        b_hh = jax.random.uniform(k4, (4 * H,), jnp.float32, -bound, bound)
        layers.append((w_ih.T, w_hh.T, (b_ih + b_hh).reshape(1, 4 * H)))
    key, k5, k6 = jax.random.split(key, 3)
    fc_w = jax.random.uniform(k5, (output_size, H), jnp.float32, -bound, bound)
    fc_b = jax.random.uniform(k6, (output_size,), jnp.float32, -bound, bound)
    return {
        "lstm_layers": layers,
        "fc_w_t": fc_w.T,
        "fc_b": fc_b.reshape(1, output_size),
    }


# ----------------------------------------------------------------------------
# Pure-JAX reference (correctness check only)
# ----------------------------------------------------------------------------
def lstm_model_ref(x_btd, params):
    B = x_btd.shape[0]
    h_seq = jnp.transpose(x_btd, (1, 0, 2))  # (T, B, D)
    for (w_ih_t, w_hh_t, bias) in params["lstm_layers"]:
        Hh = w_hh_t.shape[0]
        h0 = jnp.zeros((B, Hh), jnp.float32)
        c0 = jnp.zeros((B, Hh), jnp.float32)

        def step(carry, x_t, w_ih_t=w_ih_t, w_hh_t=w_hh_t, bias=bias, Hh=Hh):
            h, c = carry
            gates = x_t @ w_ih_t + h @ w_hh_t + bias
            i_g = jax.nn.sigmoid(gates[:, 0 * Hh:1 * Hh])
            f_g = jax.nn.sigmoid(gates[:, 1 * Hh:2 * Hh])
            g_g = jnp.tanh(gates[:, 2 * Hh:3 * Hh])
            o_g = jax.nn.sigmoid(gates[:, 3 * Hh:4 * Hh])
            c_n = f_g * c + i_g * g_g
            h_n = o_g * jnp.tanh(c_n)
            return (h_n, c_n), h_n

        _, h_seq = jax.lax.scan(step, (h0, c0), h_seq)
    return h_seq[-1] @ params["fc_w_t"] + params["fc_b"]


# ----------------------------------------------------------------------------
if __name__ == "__main__":
    batch = 2
    seq = 8
    input_size = 4
    hidden_size = 32
    num_layers = 2
    output_size = 1

    key = jax.random.PRNGKey(0)
    key, pkey, xkey = jax.random.split(key, 3)
    params = init_params(pkey, input_size, hidden_size, num_layers, output_size)
    x = jax.random.normal(xkey, (batch, seq, input_size), jnp.float32)

    out = jax.block_until_ready(lstm_model_forward(x, params))
    ref = jax.block_until_ready(lstm_model_ref(x, params))

    assert out.shape == (batch, output_size), out.shape
    assert jnp.allclose(out, ref, atol=1e-4, rtol=1e-4), (out, ref)

    print("KERNEL_OK")
</pallas_src>

<mosaic_0001>
module attributes {stable_mosaic.version = 11 : i64} {
  func.func @kernel(%arg0: memref<8x8x4xf32, #tpu.memory_space<vmem>>, %arg1: memref<4x128xf32, #tpu.memory_space<vmem>>, %arg2: memref<32x128xf32, #tpu.memory_space<vmem>>, %arg3: memref<1x128xf32, #tpu.memory_space<vmem>>, %arg4: memref<32x128xf32, #tpu.memory_space<vmem>>, %arg5: memref<32x128xf32, #tpu.memory_space<vmem>>, %arg6: memref<1x128xf32, #tpu.memory_space<vmem>>, %arg7: memref<32x128xf32, #tpu.memory_space<vmem>>, %arg8: memref<1x128xf32, #tpu.memory_space<vmem>>, %arg9: memref<8x128xf32, #tpu.memory_space<vmem>>, %arg10: memref<8x8x128xf32, #tpu.memory_space<vmem>>, %arg11: memref<8x8x32xf32, #tpu.memory_space<vmem>>) attributes {dimension_semantics = [], scalar_prefetch = 0 : i64, scratch_operands = 2 : i64, tpu.core_type = #tpu.core_type<tc>} {
    %c0 = arith.constant 0 : index
    %c0_0 = arith.constant 0 : index
    %0 = vector.load %arg1[%c0, %c0_0] : memref<4x128xf32, #tpu.memory_space<vmem>>, vector<4x128xf32>
    %c0_1 = arith.constant 0 : index
    %c0_2 = arith.constant 0 : index
    %1 = vector.load %arg2[%c0_1, %c0_2] : memref<32x128xf32, #tpu.memory_space<vmem>>, vector<32x128xf32>
    %c0_3 = arith.constant 0 : index
    %c0_4 = arith.constant 0 : index
    %2 = vector.load %arg3[%c0_3, %c0_4] : memref<1x128xf32, #tpu.memory_space<vmem>>, vector<1x128xf32>
    %c0_5 = arith.constant 0 : index
    %c0_6 = arith.constant 0 : index
    %c0_7 = arith.constant 0 : index
    %3 = vector.load %arg0[%c0_5, %c0_6, %c0_7] : memref<8x8x4xf32, #tpu.memory_space<vmem>>, vector<8x8x4xf32>
    %4 = vector.shape_cast %3 : vector<8x8x4xf32> to vector<64x4xf32>
    %cst = arith.constant dense<0.000000e+00> : vector<64x128xf32>
    %5 = tpu.matmul %4, %0, %cst {dimension_numbers = #tpu.dot_dimension_numbers<[1], [0], [0], [1], [0, 0, 1, 1], [], []>} : vector<64x4xf32>, vector<4x128xf32>, vector<64x128xf32> -> vector<64x128xf32>
    %6 = vector.broadcast %2 : vector<1x128xf32> to vector<64x128xf32>
    %7 = arith.addf %5, %6 : vector<64x128xf32>
    %8 = vector.shape_cast %7 : vector<64x128xf32> to vector<8x8x128xf32>
    %c0_8 = arith.constant 0 : index
    %c0_9 = arith.constant 0 : index
    %c0_10 = arith.constant 0 : index
    %9 = vector.load %arg10[%c0_8, %c0_9, %c0_10] : memref<8x8x128xf32, #tpu.memory_space<vmem>>, vector<8x8x128xf32>
    tpu.vector_store %arg10[%c0_8, %c0_9, %c0_10], %8 {strides = array<i32>} : memref<8x8x128xf32, #tpu.memory_space<vmem>>, vector<8x8x128xf32>,
    %cst_11 = arith.constant 0.000000e+00 : f32
    %10 = vector.broadcast %cst_11 : f32 to vector<8x32xf32>
    %cst_12 = arith.constant 0.000000e+00 : f32
    %11 = vector.broadcast %cst_12 : f32 to vector<8x32xf32>
    %c0_i32 = arith.constant 0 : i32
    %12 = arith.index_cast %c0_i32 : i32 to index
    %c0_13 = arith.constant 0 : index
    %c0_14 = arith.constant 0 : index
    %13 = vector.load %arg10[%12, %c0_13, %c0_14] : memref<8x8x128xf32, #tpu.memory_space<vmem>>, vector<1x8x128xf32>
    %14 = vector.shape_cast %13 : vector<1x8x128xf32> to vector<8x128xf32>
    %cst_15 = arith.constant dense<0.000000e+00> : vector<8x128xf32>
    %15 = tpu.matmul %10, %1, %cst_15 {dimension_numbers = #tpu.dot_dimension_numbers<[1], [0], [0], [1], [0, 0, 1, 1], [], []>} : vector<8x32xf32>, vector<32x128xf32>, vector<8x128xf32> -> vector<8x128xf32>
    %16 = arith.addf %14, %15 : vector<8x128xf32>
    %17 = arith.negf %16 : vector<8x128xf32>
    %18 = math.exp %17 : vector<8x128xf32>
    %cst_16 = arith.constant 1.000000e+00 : f32
    %19 = vector.broadcast %cst_16 : f32 to vector<8x128xf32>
    %20 = arith.addf %19, %18 : vector<8x128xf32>
    %21 = arith.divf %19, %20 : vector<8x128xf32>
    %22 = math.tanh %16 : vector<8x128xf32>
    %23 = vector.extract_strided_slice %21 {offsets = [0, 0], sizes = [8, 32], strides = [1, 1]} : vector<8x128xf32> to vector<8x32xf32>
    %24 = vector.extract_strided_slice %21 {offsets = [0, 32], sizes = [8, 32], strides = [1, 1]} : vector<8x128xf32> to vector<8x32xf32>
    %25 = vector.extract_strided_slice %22 {offsets = [0, 64], sizes = [8, 32], strides = [1, 1]} : vector<8x128xf32> to vector<8x32xf32>
    %26 = vector.extract_strided_slice %21 {offsets = [0, 96], sizes = [8, 32], strides = [1, 1]} : vector<8x128xf32> to vector<8x32xf32>
    %27 = arith.mulf %24, %11 : vector<8x32xf32>
    %28 = arith.mulf %23, %25 : vector<8x32xf32>
    %29 = arith.addf %27, %28 : vector<8x32xf32>
    %30 = math.tanh %29 : vector<8x32xf32>
    %31 = arith.mulf %26, %30 : vector<8x32xf32>
    %32 = arith.index_cast %c0_i32 : i32 to index
    %c0_17 = arith.constant 0 : index
    %c0_18 = arith.constant 0 : index
    %33 = vector.load %arg11[%32, %c0_17, %c0_18] : memref<8x8x32xf32, #tpu.memory_space<vmem>>, vector<1x8x32xf32>
    %34 = vector.shape_cast %33 : vector<1x8x32xf32> to vector<8x32xf32>
    %35 = vector.shape_cast %31 : vector<8x32xf32> to vector<1x8x32xf32>
    tpu.vector_store %arg11[%32, %c0_17, %c0_18], %35 {strides = array<i32>} : memref<8x8x32xf32, #tpu.memory_space<vmem>>, vector<1x8x32xf32>,
    %c1_i32 = arith.constant 1 : i32
    %36 = arith.index_cast %c1_i32 : i32 to index
    %c0_19 = arith.constant 0 : index
    %c0_20 = arith.constant 0 : index
    %37 = vector.load %arg10[%36, %c0_19, %c0_20] : memref<8x8x128xf32, #tpu.memory_space<vmem>>, vector<1x8x128xf32>
    %38 = vector.shape_cast %37 : vector<1x8x128xf32> to vector<8x128xf32>
    %cst_21 = arith.constant dense<0.000000e+00> : vector<8x128xf32>
    %39 = tpu.matmul %31, %1, %cst_21 {dimension_numbers = #tpu.dot_dimension_numbers<[1], [0], [0], [1], [0, 0, 1, 1], [], []>} : vector<8x32xf32>, vector<32x128xf32>, vector<8x128xf32> -> vector<8x128xf32>
    %40 = arith.addf %38, %39 : vector<8x128xf32>
    %41 = arith.negf %40 : vector<8x128xf32>
    %42 = math.exp %41 : vector<8x128xf32>
    %cst_22 = arith.constant 1.000000e+00 : f32
    %43 = vector.broadcast %cst_22 : f32 to vector<8x128xf32>
    %44 = arith.addf %43, %42 : vector<8x128xf32>
    %45 = arith.divf %43, %44 : vector<8x128xf32>
    %46 = math.tanh %40 : vector<8x128xf32>
    %47 = vector.extract_strided_slice %45 {offsets = [0, 0], sizes = [8, 32], strides = [1, 1]} : vector<8x128xf32> to vector<8x32xf32>
    %48 = vector.extract_strided_slice %45 {offsets = [0, 32], sizes = [8, 32], strides = [1, 1]} : vector<8x128xf32> to vector<8x32xf32>
    %49 = vector.extract_strided_slice %46 {offsets = [0, 64], sizes = [8, 32], strides = [1, 1]} : vector<8x128xf32> to vector<8x32xf32>
    %50 = vector.extract_strided_slice %45 {offsets = [0, 96], sizes = [8, 32], strides = [1, 1]} : vector<8x128xf32> to vector<8x32xf32>
    %51 = arith.mulf %48, %29 : vector<8x32xf32>
    %52 = arith.mulf %47, %49 : vector<8x32xf32>
    %53 = arith.addf %51, %52 : vector<8x32xf32>
    %54 = math.tanh %53 : vector<8x32xf32>
    %55 = arith.mulf %50, %54 : vector<8x32xf32>
    %56 = arith.index_cast %c1_i32 : i32 to index
    %c0_23 = arith.constant 0 : index
    %c0_24 = arith.constant 0 : index
    %57 = vector.load %arg11[%56, %c0_23, %c0_24] : memref<8x8x32xf32, #tpu.memory_space<vmem>>, vector<1x8x32xf32>
    %58 = vector.shape_cast %57 : vector<1x8x32xf32> to vector<8x32xf32>
    %59 = vector.shape_cast %55 : vector<8x32xf32> to vector<1x8x32xf32>
    tpu.vector_store %arg11[%56, %c0_23, %c0_24], %59 {strides = array<i32>} : memref<8x8x32xf32, #tpu.memory_space<vmem>>, vector<1x8x32xf32>,
    %c2_i32 = arith.constant 2 : i32
    %60 = arith.index_cast %c2_i32 : i32 to index
    %c0_25 = arith.constant 0 : index
    %c0_26 = arith.constant 0 : index
    %61 = vector.load %arg10[%60, %c0_25, %c0_26] : memref<8x8x128xf32, #tpu.memory_space<vmem>>, vector<1x8x128xf32>
    %62 = vector.shape_cast %61 : vector<1x8x128xf32> to vector<8x128xf32>
    %cst_27 = arith.constant dense<0.000000e+00> : vector<8x128xf32>
    %63 = tpu.matmul %55, %1, %cst_27 {dimension_numbers = #tpu.dot_dimension_numbers<[1], [0], [0], [1], [0, 0, 1, 1], [], []>} : vector<8x32xf32>, vector<32x128xf32>, vector<8x128xf32> -> vector<8x128xf32>
    %64 = arith.addf %62, %63 : vector<8x128xf32>
    %65 = arith.negf %64 : vector<8x128xf32>
    %66 = math.exp %65 : vector<8x128xf32>
    %cst_28 = arith.constant 1.000000e+00 : f32
    %67 = vector.broadcast %cst_28 : f32 to vector<8x128xf32>
    %68 = arith.addf %67, %66 : vector<8x128xf32>
    %69 = arith.divf %67, %68 : vector<8x128xf32>
    %70 = math.tanh %64 : vector<8x128xf32>
    %71 = vector.extract_strided_slice %69 {offsets = [0, 0], sizes = [8, 32], strides = [1, 1]} : vector<8x128xf32> to vector<8x32xf32>
    %72 = vector.extract_strided_slice %69 {offsets = [0, 32], sizes = [8, 32], strides = [1, 1]} : vector<8x128xf32> to vector<8x32xf32>
    %73 = vector.extract_strided_slice %70 {offsets = [0, 64], sizes = [8, 32], strides = [1, 1]} : vector<8x128xf32> to vector<8x32xf32>
    %74 = vector.extract_strided_slice %69 {offsets = [0, 96], sizes = [8, 32], strides = [1, 1]} : vector<8x128xf32> to vector<8x32xf32>
    %75 = arith.mulf %72, %53 : vector<8x32xf32>
    %76 = arith.mulf %71, %73 : vector<8x32xf32>
    %77 = arith.addf %75, %76 : vector<8x32xf32>
    %78 = math.tanh %77 : vector<8x32xf32>
    %79 = arith.mulf %74, %78 : vector<8x32xf32>
    %80 = arith.index_cast %c2_i32 : i32 to index
    %c0_29 = arith.constant 0 : index
    %c0_30 = arith.constant 0 : index
    %81 = vector.load %arg11[%80, %c0_29, %c0_30] : memref<8x8x32xf32, #tpu.memory_space<vmem>>, vector<1x8x32xf32>
    %82 = vector.shape_cast %81 : vector<1x8x32xf32> to vector<8x32xf32>
    %83 = vector.shape_cast %79 : vector<8x32xf32> to vector<1x8x32xf32>
    tpu.vector_store %arg11[%80, %c0_29, %c0_30], %83 {strides = array<i32>} : memref<8x8x32xf32, #tpu.memory_space<vmem>>, vector<1x8x32xf32>,
    %c3_i32 = arith.constant 3 : i32
    %84 = arith.index_cast %c3_i32 : i32 to index
    %c0_31 = arith.constant 0 : index
    %c0_32 = arith.constant 0 : index
    %85 = vector.load %arg10[%84, %c0_31, %c0_32] : memref<8x8x128xf32, #tpu.memory_space<vmem>>, vector<1x8x128xf32>
    %86 = vector.shape_cast %85 : vector<1x8x128xf32> to vector<8x128xf32>
    %cst_33 = arith.constant dense<0.000000e+00> : vector<8x128xf32>
    %87 = tpu.matmul %79, %1, %cst_33 {dimension_numbers = #tpu.dot_dimension_numbers<[1], [0], [0], [1], [0, 0, 1, 1], [], []>} : vector<8x32xf32>, vector<32x128xf32>, vector<8x128xf32> -> vector<8x128xf32>
    %88 = arith.addf %86, %87 : vector<8x128xf32>
    %89 = arith.negf %88 : vector<8x128xf32>
    %90 = math.exp %89 : vector<8x128xf32>
    %cst_34 = arith.constant 1.000000e+00 : f32
    %91 = vector.broadcast %cst_34 : f32 to vector<8x128xf32>
    %92 = arith.addf %91, %90 : vector<8x128xf32>
    %93 = arith.divf %91, %92 : vector<8x128xf32>
    %94 = math.tanh %88 : vector<8x128xf32>
    %95 = vector.extract_strided_slice %93 {offsets = [0, 0], sizes = [8, 32], strides = [1, 1]} : vector<8x128xf32> to vector<8x32xf32>
    %96 = vector.extract_strided_slice %93 {offsets = [0, 32], sizes = [8, 32], strides = [1, 1]} : vector<8x128xf32> to vector<8x32xf32>
    %97 = vector.extract_strided_slice %94 {offsets = [0, 64], sizes = [8, 32], strides = [1, 1]} : vector<8x128xf32> to vector<8x32xf32>
    %98 = vector.extract_strided_slice %93 {offsets = [0, 96], sizes = [8, 32], strides = [1, 1]} : vector<8x128xf32> to vector<8x32xf32>
    %99 = arith.mulf %96, %77 : vector<8x32xf32>
    %100 = arith.mulf %95, %97 : vector<8x32xf32>
    %101 = arith.addf %99, %100 : vector<8x32xf32>
    %102 = math.tanh %101 : vector<8x32xf32>
    %103 = arith.mulf %98, %102 : vector<8x32xf32>
    %104 = arith.index_cast %c3_i32 : i32 to index
    %c0_35 = arith.constant 0 : index
    %c0_36 = arith.constant 0 : index
    %105 = vector.load %arg11[%104, %c0_35, %c0_36] : memref<8x8x32xf32, #tpu.memory_space<vmem>>, vector<1x8x32xf32>
    %106 = vector.shape_cast %105 : vector<1x8x32xf32> to vector<8x32xf32>
    %107 = vector.shape_cast %103 : vector<8x32xf32> to vector<1x8x32xf32>
    tpu.vector_store %arg11[%104, %c0_35, %c0_36], %107 {strides = array<i32>} : memref<8x8x32xf32, #tpu.memory_space<vmem>>, vector<1x8x32xf32>,
    %c4_i32 = arith.constant 4 : i32
    %108 = arith.index_cast %c4_i32 : i32 to index
    %c0_37 = arith.constant 0 : index
    %c0_38 = arith.constant 0 : index
    %109 = vector.load %arg10[%108, %c0_37, %c0_38] : memref<8x8x128xf32, #tpu.memory_space<vmem>>, vector<1x8x128xf32>
    %110 = vector.shape_cast %109 : vector<1x8x128xf32> to vector<8x128xf32>
    %cst_39 = arith.constant dense<0.000000e+00> : vector<8x128xf32>
    %111 = tpu.matmul %103, %1, %cst_39 {dimension_numbers = #tpu.dot_dimension_numbers<[1], [0], [0], [1], [0, 0, 1, 1], [], []>} : vector<8x32xf32>, vector<32x128xf32>, vector<8x128xf32> -> vector<8x128xf32>
    %112 = arith.addf %110, %111 : vector<8x128xf32>
    %113 = arith.negf %112 : vector<8x128xf32>
    %114 = math.exp %113 : vector<8x128xf32>
    %cst_40 = arith.constant 1.000000e+00 : f32
    %115 = vector.broadcast %cst_40 : f32 to vector<8x128xf32>
    %116 = arith.addf %115, %114 : vector<8x128xf32>
    %117 = arith.divf %115, %116 : vector<8x128xf32>
    %118 = math.tanh %112 : vector<8x128xf32>
    %119 = vector.extract_strided_slice %117 {offsets = [0, 0], sizes = [8, 32], strides = [1, 1]} : vector<8x128xf32> to vector<8x32xf32>
    %120 = vector.extract_strided_slice %117 {offsets = [0, 32], sizes = [8, 32], strides = [1, 1]} : vector<8x128xf32> to vector<8x32xf32>
    %121 = vector.extract_strided_slice %118 {offsets = [0, 64], sizes = [8, 32], strides = [1, 1]} : vector<8x128xf32> to vector<8x32xf32>
    %122 = vector.extract_strided_slice %117 {offsets = [0, 96], sizes = [8, 32], strides = [1, 1]} : vector<8x128xf32> to vector<8x32xf32>
    %123 = arith.mulf %120, %101 : vector<8x32xf32>
    %124 = arith.mulf %119, %121 : vector<8x32xf32>
    %125 = arith.addf %123, %124 : vector<8x32xf32>
    %126 = math.tanh %125 : vector<8x32xf32>
    %127 = arith.mulf %122, %126 : vector<8x32xf32>
    %128 = arith.index_cast %c4_i32 : i32 to index
    %c0_41 = arith.constant 0 : index
    %c0_42 = arith.constant 0 : index
    %129 = vector.load %arg11[%128, %c0_41, %c0_42] : memref<8x8x32xf32, #tpu.memory_space<vmem>>, vector<1x8x32xf32>
    %130 = vector.shape_cast %129 : vector<1x8x32xf32> to vector<8x32xf32>
    %131 = vector.shape_cast %127 : vector<8x32xf32> to vector<1x8x32xf32>
    tpu.vector_store %arg11[%128, %c0_41, %c0_42], %131 {strides = array<i32>} : memref<8x8x32xf32, #tpu.memory_space<vmem>>, vector<1x8x32xf32>,
    %c5_i32 = arith.constant 5 : i32
    %132 = arith.index_cast %c5_i32 : i32 to index
    %c0_43 = arith.constant 0 : index
    %c0_44 = arith.constant 0 : index
    %133 = vector.load %arg10[%132, %c0_43, %c0_44] : memref<8x8x128xf32, #tpu.memory_space<vmem>>, vector<1x8x128xf32>
    %134 = vector.shape_cast %133 : vector<1x8x128xf32> to vector<8x128xf32>
    %cst_45 = arith.constant dense<0.000000e+00> : vector<8x128xf32>
    %135 = tpu.matmul %127, %1, %cst_45 {dimension_numbers = #tpu.dot_dimension_numbers<[1], [0], [0], [1], [0, 0, 1, 1], [], []>} : vector<8x32xf32>, vector<32x128xf32>, vector<8x128xf32> -> vector<8x128xf32>
    %136 = arith.addf %134, %135 : vector<8x128xf32>
    %137 = arith.negf %136 : vector<8x128xf32>
    %138 = math.exp %137 : vector<8x128xf32>
    %cst_46 = arith.constant 1.000000e+00 : f32
    %139 = vector.broadcast %cst_46 : f32 to vector<8x128xf32>
    %140 = arith.addf %139, %138 : vector<8x128xf32>
    %141 = arith.divf %139, %140 : vector<8x128xf32>
    %142 = math.tanh %136 : vector<8x128xf32>
    %143 = vector.extract_strided_slice %141 {offsets = [0, 0], sizes = [8, 32], strides = [1, 1]} : vector<8x128xf32> to vector<8x32xf32>
    %144 = vector.extract_strided_slice %141 {offsets = [0, 32], sizes = [8, 32], strides = [1, 1]} : vector<8x128xf32> to vector<8x32xf32>
    %145 = vector.extract_strided_slice %142 {offsets = [0, 64], sizes = [8, 32], strides = [1, 1]} : vector<8x128xf32> to vector<8x32xf32>
    %146 = vector.extract_strided_slice %141 {offsets = [0, 96], sizes = [8, 32], strides = [1, 1]} : vector<8x128xf32> to vector<8x32xf32>
    %147 = arith.mulf %144, %125 : vector<8x32xf32>
    %148 = arith.mulf %143, %145 : vector<8x32xf32>
    %149 = arith.addf %147, %148 : vector<8x32xf32>
    %150 = math.tanh %149 : vector<8x32xf32>
    %151 = arith.mulf %146, %150 : vector<8x32xf32>
    %152 = arith.index_cast %c5_i32 : i32 to index
    %c0_47 = arith.constant 0 : index
    %c0_48 = arith.constant 0 : index
    %153 = vector.load %arg11[%152, %c0_47, %c0_48] : memref<8x8x32xf32, #tpu.memory_space<vmem>>, vector<1x8x32xf32>
    %154 = vector.shape_cast %153 : vector<1x8x32xf32> to vector<8x32xf32>
    %155 = vector.shape_cast %151 : vector<8x32xf32> to vector<1x8x32xf32>
    tpu.vector_store %arg11[%152, %c0_47, %c0_48], %155 {strides = array<i32>} : memref<8x8x32xf32, #tpu.memory_space<vmem>>, vector<1x8x32xf32>,
    %c6_i32 = arith.constant 6 : i32
    %156 = arith.index_cast %c6_i32 : i32 to index
    %c0_49 = arith.constant 0 : index
    %c0_50 = arith.constant 0 : index
    %157 = vector.load %arg10[%156, %c0_49, %c0_50] : memref<8x8x128xf32, #tpu.memory_space<vmem>>, vector<1x8x128xf32>
    %158 = vector.shape_cast %157 : vector<1x8x128xf32> to vector<8x128xf32>
    %cst_51 = arith.constant dense<0.000000e+00> : vector<8x128xf32>
    %159 = tpu.matmul %151, %1, %cst_51 {dimension_numbers = #tpu.dot_dimension_numbers<[1], [0], [0], [1], [0, 0, 1, 1], [], []>} : vector<8x32xf32>, vector<32x128xf32>, vector<8x128xf32> -> vector<8x128xf32>
    %160 = arith.addf %158, %159 : vector<8x128xf32>
    %161 = arith.negf %160 : vector<8x128xf32>
    %162 = math.exp %161 : vector<8x128xf32>
    %cst_52 = arith.constant 1.000000e+00 : f32
    %163 = vector.broadcast %cst_52 : f32 to vector<8x128xf32>
    %164 = arith.addf %163, %162 : vector<8x128xf32>
    %165 = arith.divf %163, %164 : vector<8x128xf32>
    %166 = math.tanh %160 : vector<8x128xf32>
    %167 = vector.extract_strided_slice %165 {offsets = [0, 0], sizes = [8, 32], strides = [1, 1]} : vector<8x128xf32> to vector<8x32xf32>
    %168 = vector.extract_strided_slice %165 {offsets = [0, 32], sizes = [8, 32], strides = [1, 1]} : vector<8x128xf32> to vector<8x32xf32>
    %169 = vector.extract_strided_slice %166 {offsets = [0, 64], sizes = [8, 32], strides = [1, 1]} : vector<8x128xf32> to vector<8x32xf32>
    %170 = vector.extract_strided_slice %165 {offsets = [0, 96], sizes = [8, 32], strides = [1, 1]} : vector<8x128xf32> to vector<8x32xf32>
    %171 = arith.mulf %168, %149 : vector<8x32xf32>
    %172 = arith.mulf %167, %169 : vector<8x32xf32>
    %173 = arith.addf %171, %172 : vector<8x32xf32>
    %174 = math.tanh %173 : vector<8x32xf32>
    %175 = arith.mulf %170, %174 : vector<8x32xf32>
    %176 = arith.index_cast %c6_i32 : i32 to index
    %c0_53 = arith.constant 0 : index
    %c0_54 = arith.constant 0 : index
    %177 = vector.load %arg11[%176, %c0_53, %c0_54] : memref<8x8x32xf32, #tpu.memory_space<vmem>>, vector<1x8x32xf32>
    %178 = vector.shape_cast %177 : vector<1x8x32xf32> to vector<8x32xf32>
    %179 = vector.shape_cast %175 : vector<8x32xf32> to vector<1x8x32xf32>
    tpu.vector_store %arg11[%176, %c0_53, %c0_54], %179 {strides = array<i32>} : memref<8x8x32xf32, #tpu.memory_space<vmem>>, vector<1x8x32xf32>,
    %c7_i32 = arith.constant 7 : i32
    %180 = arith.index_cast %c7_i32 : i32 to index
    %c0_55 = arith.constant 0 : index
    %c0_56 = arith.constant 0 : index
    %181 = vector.load %arg10[%180, %c0_55, %c0_56] : memref<8x8x128xf32, #tpu.memory_space<vmem>>, vector<1x8x128xf32>
    %182 = vector.shape_cast %181 : vector<1x8x128xf32> to vector<8x128xf32>
    %cst_57 = arith.constant dense<0.000000e+00> : vector<8x128xf32>
    %183 = tpu.matmul %175, %1, %cst_57 {dimension_numbers = #tpu.dot_dimension_numbers<[1], [0], [0], [1], [0, 0, 1, 1], [], []>} : vector<8x32xf32>, vector<32x128xf32>, vector<8x128xf32> -> vector<8x128xf32>
    %184 = arith.addf %182, %183 : vector<8x128xf32>
    %185 = arith.negf %184 : vector<8x128xf32>
    %186 = math.exp %185 : vector<8x128xf32>
    %cst_58 = arith.constant 1.000000e+00 : f32
    %187 = vector.broadcast %cst_58 : f32 to vector<8x128xf32>
    %188 = arith.addf %187, %186 : vector<8x128xf32>
    %189 = arith.divf %187, %188 : vector<8x128xf32>
    %190 = math.tanh %184 : vector<8x128xf32>
    %191 = vector.extract_strided_slice %189 {offsets = [0, 0], sizes = [8, 32], strides = [1, 1]} : vector<8x128xf32> to vector<8x32xf32>
    %192 = vector.extract_strided_slice %189 {offsets = [0, 32], sizes = [8, 32], strides = [1, 1]} : vector<8x128xf32> to vector<8x32xf32>
    %193 = vector.extract_strided_slice %190 {offsets = [0, 64], sizes = [8, 32], strides = [1, 1]} : vector<8x128xf32> to vector<8x32xf32>
    %194 = vector.extract_strided_slice %189 {offsets = [0, 96], sizes = [8, 32], strides = [1, 1]} : vector<8x128xf32> to vector<8x32xf32>
    %195 = arith.mulf %192, %173 : vector<8x32xf32>
    %196 = arith.mulf %191, %193 : vector<8x32xf32>
    %197 = arith.addf %195, %196 : vector<8x32xf32>
    %198 = math.tanh %197 : vector<8x32xf32>
    %199 = arith.mulf %194, %198 : vector<8x32xf32>
    %200 = arith.index_cast %c7_i32 : i32 to index
    %c0_59 = arith.constant 0 : index
    %c0_60 = arith.constant 0 : index
    %201 = vector.load %arg11[%200, %c0_59, %c0_60] : memref<8x8x32xf32, #tpu.memory_space<vmem>>, vector<1x8x32xf32>
    %202 = vector.shape_cast %201 : vector<1x8x32xf32> to vector<8x32xf32>
    %203 = vector.shape_cast %199 : vector<8x32xf32> to vector<1x8x32xf32>
    tpu.vector_store %arg11[%200, %c0_59, %c0_60], %203 {strides = array<i32>} : memref<8x8x32xf32, #tpu.memory_space<vmem>>, vector<1x8x32xf32>,
    %c8_i32 = arith.constant 8 : i32
    %c0_61 = arith.constant 0 : index
    %c0_62 = arith.constant 0 : index
    %204 = vector.load %arg4[%c0_61, %c0_62] : memref<32x128xf32, #tpu.memory_space<vmem>>, vector<32x128xf32>
    %c0_63 = arith.constant 0 : index
    %c0_64 = arith.constant 0 : index
    %205 = vector.load %arg5[%c0_63, %c0_64] : memref<32x128xf32, #tpu.memory_space<vmem>>, vector<32x128xf32>
    %c0_65 = arith.constant 0 : index
    %c0_66 = arith.constant 0 : index
    %206 = vector.load %arg6[%c0_65, %c0_66] : memref<1x128xf32, #tpu.memory_space<vmem>>, vector<1x128xf32>
    %c0_67 = arith.constant 0 : index
    %c0_68 = arith.constant 0 : index
    %c0_69 = arith.constant 0 : index
    %207 = vector.load %arg11[%c0_67, %c0_68, %c0_69] : memref<8x8x32xf32, #tpu.memory_space<vmem>>, vector<8x8x32xf32>
    %208 = vector.shape_cast %207 : vector<8x8x32xf32> to vector<64x32xf32>
    %cst_70 = arith.constant dense<0.000000e+00> : vector<64x128xf32>
    %209 = tpu.matmul %208, %204, %cst_70 {dimension_numbers = #tpu.dot_dimension_numbers<[1], [0], [0], [1], [0, 0, 1, 1], [], []>} : vector<64x32xf32>, vector<32x128xf32>, vector<64x128xf32> -> vector<64x128xf32>
    %210 = vector.broadcast %206 : vector<1x128xf32> to vector<64x128xf32>
    %211 = arith.addf %209, %210 : vector<64x128xf32>
    %212 = vector.shape_cast %211 : vector<64x128xf32> to vector<8x8x128xf32>
    %c0_71 = arith.constant 0 : index
    %c0_72 = arith.constant 0 : index
    %c0_73 = arith.constant 0 : index
    %213 = vector.load %arg10[%c0_71, %c0_72, %c0_73] : memref<8x8x128xf32, #tpu.memory_space<vmem>>, vector<8x8x128xf32>
    tpu.vector_store %arg10[%c0_71, %c0_72, %c0_73], %212 {strides = array<i32>} : memref<8x8x128xf32, #tpu.memory_space<vmem>>, vector<8x8x128xf32>,
    %cst_74 = arith.constant 0.000000e+00 : f32
    %214 = vector.broadcast %cst_74 : f32 to vector<8x32xf32>
    %cst_75 = arith.constant 0.000000e+00 : f32
    %215 = vector.broadcast %cst_75 : f32 to vector<8x32xf32>
    %c0_i32_76 = arith.constant 0 : i32
    %216 = arith.index_cast %c0_i32_76 : i32 to index
    %c0_77 = arith.constant 0 : index
    %c0_78 = arith.constant 0 : index
    %217 = vector.load %arg10[%216, %c0_77, %c0_78] : memref<8x8x128xf32, #tpu.memory_space<vmem>>, vector<1x8x128xf32>
    %218 = vector.shape_cast %217 : vector<1x8x128xf32> to vector<8x128xf32>
    %cst_79 = arith.constant dense<0.000000e+00> : vector<8x128xf32>
    %219 = tpu.matmul %214, %205, %cst_79 {dimension_numbers = #tpu.dot_dimension_numbers<[1], [0], [0], [1], [0, 0, 1, 1], [], []>} : vector<8x32xf32>, vector<32x128xf32>, vector<8x128xf32> -> vector<8x128xf32>
    %220 = arith.addf %218, %219 : vector<8x128xf32>
    %221 = arith.negf %220 : vector<8x128xf32>
    %222 = math.exp %221 : vector<8x128xf32>
    %cst_80 = arith.constant 1.000000e+00 : f32
    %223 = vector.broadcast %cst_80 : f32 to vector<8x128xf32>
    %224 = arith.addf %223, %222 : vector<8x128xf32>
    %225 = arith.divf %223, %224 : vector<8x128xf32>
    %226 = math.tanh %220 : vector<8x128xf32>
    %227 = vector.extract_strided_slice %225 {offsets = [0, 0], sizes = [8, 32], strides = [1, 1]} : vector<8x128xf32> to vector<8x32xf32>
    %228 = vector.extract_strided_slice %225 {offsets = [0, 32], sizes = [8, 32], strides = [1, 1]} : vector<8x128xf32> to vector<8x32xf32>
    %229 = vector.extract_strided_slice %226 {offsets = [0, 64], sizes = [8, 32], strides = [1, 1]} : vector<8x128xf32> to vector<8x32xf32>
    %230 = vector.extract_strided_slice %225 {offsets = [0, 96], sizes = [8, 32], strides = [1, 1]} : vector<8x128xf32> to vector<8x32xf32>
    %231 = arith.mulf %228, %215 : vector<8x32xf32>
    %232 = arith.mulf %227, %229 : vector<8x32xf32>
    %233 = arith.addf %231, %232 : vector<8x32xf32>
    %234 = math.tanh %233 : vector<8x32xf32>
    %235 = arith.mulf %230, %234 : vector<8x32xf32>
    %c1_i32_81 = arith.constant 1 : i32
    %236 = arith.index_cast %c1_i32_81 : i32 to index
    %c0_82 = arith.constant 0 : index
    %c0_83 = arith.constant 0 : index
    %237 = vector.load %arg10[%236, %c0_82, %c0_83] : memref<8x8x128xf32, #tpu.memory_space<vmem>>, vector<1x8x128xf32>
    %238 = vector.shape_cast %237 : vector<1x8x128xf32> to vector<8x128xf32>
    %cst_84 = arith.constant dense<0.000000e+00> : vector<8x128xf32>
    %239 = tpu.matmul %235, %205, %cst_84 {dimension_numbers = #tpu.dot_dimension_numbers<[1], [0], [0], [1], [0, 0, 1, 1], [], []>} : vector<8x32xf32>, vector<32x128xf32>, vector<8x128xf32> -> vector<8x128xf32>
    %240 = arith.addf %238, %239 : vector<8x128xf32>
    %241 = arith.negf %240 : vector<8x128xf32>
    %242 = math.exp %241 : vector<8x128xf32>
    %cst_85 = arith.constant 1.000000e+00 : f32
    %243 = vector.broadcast %cst_85 : f32 to vector<8x128xf32>
    %244 = arith.addf %243, %242 : vector<8x128xf32>
    %245 = arith.divf %243, %244 : vector<8x128xf32>
    %246 = math.tanh %240 : vector<8x128xf32>
    %247 = vector.extract_strided_slice %245 {offsets = [0, 0], sizes = [8, 32], strides = [1, 1]} : vector<8x128xf32> to vector<8x32xf32>
    %248 = vector.extract_strided_slice %245 {offsets = [0, 32], sizes = [8, 32], strides = [1, 1]} : vector<8x128xf32> to vector<8x32xf32>
    %249 = vector.extract_strided_slice %246 {offsets = [0, 64], sizes = [8, 32], strides = [1, 1]} : vector<8x128xf32> to vector<8x32xf32>
    %250 = vector.extract_strided_slice %245 {offsets = [0, 96], sizes = [8, 32], strides = [1, 1]} : vector<8x128xf32> to vector<8x32xf32>
    %251 = arith.mulf %248, %233 : vector<8x32xf32>
    %252 = arith.mulf %247, %249 : vector<8x32xf32>
    %253 = arith.addf %251, %252 : vector<8x32xf32>
    %254 = math.tanh %253 : vector<8x32xf32>
    %255 = arith.mulf %250, %254 : vector<8x32xf32>
    %c2_i32_86 = arith.constant 2 : i32
    %256 = arith.index_cast %c2_i32_86 : i32 to index
    %c0_87 = arith.constant 0 : index
    %c0_88 = arith.constant 0 : index
    %257 = vector.load %arg10[%256, %c0_87, %c0_88] : memref<8x8x128xf32, #tpu.memory_space<vmem>>, vector<1x8x128xf32>
    %258 = vector.shape_cast %257 : vector<1x8x128xf32> to vector<8x128xf32>
    %cst_89 = arith.constant dense<0.000000e+00> : vector<8x128xf32>
    %259 = tpu.matmul %255, %205, %cst_89 {dimension_numbers = #tpu.dot_dimension_numbers<[1], [0], [0], [1], [0, 0, 1, 1], [], []>} : vector<8x32xf32>, vector<32x128xf32>, vector<8x128xf32> -> vector<8x128xf32>
    %260 = arith.addf %258, %259 : vector<8x128xf32>
    %261 = arith.negf %260 : vector<8x128xf32>
    %262 = math.exp %261 : vector<8x128xf32>
    %cst_90 = arith.constant 1.000000e+00 : f32
    %263 = vector.broadcast %cst_90 : f32 to vector<8x128xf32>
    %264 = arith.addf %263, %262 : vector<8x128xf32>
    %265 = arith.divf %263, %264 : vector<8x128xf32>
    %266 = math.tanh %260 : vector<8x128xf32>
    %267 = vector.extract_strided_slice %265 {offsets = [0, 0], sizes = [8, 32], strides = [1, 1]} : vector<8x128xf32> to vector<8x32xf32>
    %268 = vector.extract_strided_slice %265 {offsets = [0, 32], sizes = [8, 32], strides = [1, 1]} : vector<8x128xf32> to vector<8x32xf32>
    %269 = vector.extract_strided_slice %266 {offsets = [0, 64], sizes = [8, 32], strides = [1, 1]} : vector<8x128xf32> to vector<8x32xf32>
    %270 = vector.extract_strided_slice %265 {offsets = [0, 96], sizes = [8, 32], strides = [1, 1]} : vector<8x128xf32> to vector<8x32xf32>
    %271 = arith.mulf %268, %253 : vector<8x32xf32>
    %272 = arith.mulf %267, %269 : vector<8x32xf32>
    %273 = arith.addf %271, %272 : vector<8x32xf32>
    %274 = math.tanh %273 : vector<8x32xf32>
    %275 = arith.mulf %270, %274 : vector<8x32xf32>
    %c3_i32_91 = arith.constant 3 : i32
    %276 = arith.index_cast %c3_i32_91 : i32 to index
    %c0_92 = arith.constant 0 : index
    %c0_93 = arith.constant 0 : index
    %277 = vector.load %arg10[%276, %c0_92, %c0_93] : memref<8x8x128xf32, #tpu.memory_space<vmem>>, vector<1x8x128xf32>
    %278 = vector.shape_cast %277 : vector<1x8x128xf32> to vector<8x128xf32>
    %cst_94 = arith.constant dense<0.000000e+00> : vector<8x128xf32>
    %279 = tpu.matmul %275, %205, %cst_94 {dimension_numbers = #tpu.dot_dimension_numbers<[1], [0], [0], [1], [0, 0, 1, 1], [], []>} : vector<8x32xf32>, vector<32x128xf32>, vector<8x128xf32> -> vector<8x128xf32>
    %280 = arith.addf %278, %279 : vector<8x128xf32>
    %281 = arith.negf %280 : vector<8x128xf32>
    %282 = math.exp %281 : vector<8x128xf32>
    %cst_95 = arith.constant 1.000000e+00 : f32
    %283 = vector.broadcast %cst_95 : f32 to vector<8x128xf32>
    %284 = arith.addf %283, %282 : vector<8x128xf32>
    %285 = arith.divf %283, %284 : vector<8x128xf32>
    %286 = math.tanh %280 : vector<8x128xf32>
    %287 = vector.extract_strided_slice %285 {offsets = [0, 0], sizes = [8, 32], strides = [1, 1]} : vector<8x128xf32> to vector<8x32xf32>
    %288 = vector.extract_strided_slice %285 {offsets = [0, 32], sizes = [8, 32], strides = [1, 1]} : vector<8x128xf32> to vector<8x32xf32>
    %289 = vector.extract_strided_slice %286 {offsets = [0, 64], sizes = [8, 32], strides = [1, 1]} : vector<8x128xf32> to vector<8x32xf32>
    %290 = vector.extract_strided_slice %285 {offsets = [0, 96], sizes = [8, 32], strides = [1, 1]} : vector<8x128xf32> to vector<8x32xf32>
    %291 = arith.mulf %288, %273 : vector<8x32xf32>
    %292 = arith.mulf %287, %289 : vector<8x32xf32>
    %293 = arith.addf %291, %292 : vector<8x32xf32>
    %294 = math.tanh %293 : vector<8x32xf32>
    %295 = arith.mulf %290, %294 : vector<8x32xf32>
    %c4_i32_96 = arith.constant 4 : i32
    %296 = arith.index_cast %c4_i32_96 : i32 to index
    %c0_97 = arith.constant 0 : index
    %c0_98 = arith.constant 0 : index
    %297 = vector.load %arg10[%296, %c0_97, %c0_98] : memref<8x8x128xf32, #tpu.memory_space<vmem>>, vector<1x8x128xf32>
    %298 = vector.shape_cast %297 : vector<1x8x128xf32> to vector<8x128xf32>
    %cst_99 = arith.constant dense<0.000000e+00> : vector<8x128xf32>
    %299 = tpu.matmul %295, %205, %cst_99 {dimension_numbers = #tpu.dot_dimension_numbers<[1], [0], [0], [1], [0, 0, 1, 1], [], []>} : vector<8x32xf32>, vector<32x128xf32>, vector<8x128xf32> -> vector<8x128xf32>
    %300 = arith.addf %298, %299 : vector<8x128xf32>
    %301 = arith.negf %300 : vector<8x128xf32>
    %302 = math.exp %301 : vector<8x128xf32>
    %cst_100 = arith.constant 1.000000e+00 : f32
    %303 = vector.broadcast %cst_100 : f32 to vector<8x128xf32>
    %304 = arith.addf %303, %302 : vector<8x128xf32>
    %305 = arith.divf %303, %304 : vector<8x128xf32>
    %306 = math.tanh %300 : vector<8x128xf32>
    %307 = vector.extract_strided_slice %305 {offsets = [0, 0], sizes = [8, 32], strides = [1, 1]} : vector<8x128xf32> to vector<8x32xf32>
    %308 = vector.extract_strided_slice %305 {offsets = [0, 32], sizes = [8, 32], strides = [1, 1]} : vector<8x128xf32> to vector<8x32xf32>
    %309 = vector.extract_strided_slice %306 {offsets = [0, 64], sizes = [8, 32], strides = [1, 1]} : vector<8x128xf32> to vector<8x32xf32>
    %310 = vector.extract_strided_slice %305 {offsets = [0, 96], sizes = [8, 32], strides = [1, 1]} : vector<8x128xf32> to vector<8x32xf32>
    %311 = arith.mulf %308, %293 : vector<8x32xf32>
    %312 = arith.mulf %307, %309 : vector<8x32xf32>
    %313 = arith.addf %311, %312 : vector<8x32xf32>
    %314 = math.tanh %313 : vector<8x32xf32>
    %315 = arith.mulf %310, %314 : vector<8x32xf32>
    %c5_i32_101 = arith.constant 5 : i32
    %316 = arith.index_cast %c5_i32_101 : i32 to index
    %c0_102 = arith.constant 0 : index
    %c0_103 = arith.constant 0 : index
    %317 = vector.load %arg10[%316, %c0_102, %c0_103] : memref<8x8x128xf32, #tpu.memory_space<vmem>>, vector<1x8x128xf32>
    %318 = vector.shape_cast %317 : vector<1x8x128xf32> to vector<8x128xf32>
    %cst_104 = arith.constant dense<0.000000e+00> : vector<8x128xf32>
    %319 = tpu.matmul %315, %205, %cst_104 {dimension_numbers = #tpu.dot_dimension_numbers<[1], [0], [0], [1], [0, 0, 1, 1], [], []>} : vector<8x32xf32>, vector<32x128xf32>, vector<8x128xf32> -> vector<8x128xf32>
    %320 = arith.addf %318, %319 : vector<8x128xf32>
    %321 = arith.negf %320 : vector<8x128xf32>
    %322 = math.exp %321 : vector<8x128xf32>
    %cst_105 = arith.constant 1.000000e+00 : f32
    %323 = vector.broadcast %cst_105 : f32 to vector<8x128xf32>
    %324 = arith.addf %323, %322 : vector<8x128xf32>
    %325 = arith.divf %323, %324 : vector<8x128xf32>
    %326 = math.tanh %320 : vector<8x128xf32>
    %327 = vector.extract_strided_slice %325 {offsets = [0, 0], sizes = [8, 32], strides = [1, 1]} : vector<8x128xf32> to vector<8x32xf32>
    %328 = vector.extract_strided_slice %325 {offsets = [0, 32], sizes = [8, 32], strides = [1, 1]} : vector<8x128xf32> to vector<8x32xf32>
    %329 = vector.extract_strided_slice %326 {offsets = [0, 64], sizes = [8, 32], strides = [1, 1]} : vector<8x128xf32> to vector<8x32xf32>
    %330 = vector.extract_strided_slice %325 {offsets = [0, 96], sizes = [8, 32], strides = [1, 1]} : vector<8x128xf32> to vector<8x32xf32>
    %331 = arith.mulf %328, %313 : vector<8x32xf32>
    %332 = arith.mulf %327, %329 : vector<8x32xf32>
    %333 = arith.addf %331, %332 : vector<8x32xf32>
    %334 = math.tanh %333 : vector<8x32xf32>
    %335 = arith.mulf %330, %334 : vector<8x32xf32>
    %c6_i32_106 = arith.constant 6 : i32
    %336 = arith.index_cast %c6_i32_106 : i32 to index
    %c0_107 = arith.constant 0 : index
    %c0_108 = arith.constant 0 : index
    %337 = vector.load %arg10[%336, %c0_107, %c0_108] : memref<8x8x128xf32, #tpu.memory_space<vmem>>, vector<1x8x128xf32>
    %338 = vector.shape_cast %337 : vector<1x8x128xf32> to vector<8x128xf32>
    %cst_109 = arith.constant dense<0.000000e+00> : vector<8x128xf32>
    %339 = tpu.matmul %335, %205, %cst_109 {dimension_numbers = #tpu.dot_dimension_numbers<[1], [0], [0], [1], [0, 0, 1, 1], [], []>} : vector<8x32xf32>, vector<32x128xf32>, vector<8x128xf32> -> vector<8x128xf32>
    %340 = arith.addf %338, %339 : vector<8x128xf32>
    %341 = arith.negf %340 : vector<8x128xf32>
    %342 = math.exp %341 : vector<8x128xf32>
    %cst_110 = arith.constant 1.000000e+00 : f32
    %343 = vector.broadcast %cst_110 : f32 to vector<8x128xf32>
    %344 = arith.addf %343, %342 : vector<8x128xf32>
    %345 = arith.divf %343, %344 : vector<8x128xf32>
    %346 = math.tanh %340 : vector<8x128xf32>
    %347 = vector.extract_strided_slice %345 {offsets = [0, 0], sizes = [8, 32], strides = [1, 1]} : vector<8x128xf32> to vector<8x32xf32>
    %348 = vector.extract_strided_slice %345 {offsets = [0, 32], sizes = [8, 32], strides = [1, 1]} : vector<8x128xf32> to vector<8x32xf32>
    %349 = vector.extract_strided_slice %346 {offsets = [0, 64], sizes = [8, 32], strides = [1, 1]} : vector<8x128xf32> to vector<8x32xf32>
    %350 = vector.extract_strided_slice %345 {offsets = [0, 96], sizes = [8, 32], strides = [1, 1]} : vector<8x128xf32> to vector<8x32xf32>
    %351 = arith.mulf %348, %333 : vector<8x32xf32>
    %352 = arith.mulf %347, %349 : vector<8x32xf32>
    %353 = arith.addf %351, %352 : vector<8x32xf32>
    %354 = math.tanh %353 : vector<8x32xf32>
    %355 = arith.mulf %350, %354 : vector<8x32xf32>
    %c7_i32_111 = arith.constant 7 : i32
    %356 = arith.index_cast %c7_i32_111 : i32 to index
    %c0_112 = arith.constant 0 : index
    %c0_113 = arith.constant 0 : index
    %357 = vector.load %arg10[%356, %c0_112, %c0_113] : memref<8x8x128xf32, #tpu.memory_space<vmem>>, vector<1x8x128xf32>
    %358 = vector.shape_cast %357 : vector<1x8x128xf32> to vector<8x128xf32>
    %cst_114 = arith.constant dense<0.000000e+00> : vector<8x128xf32>
    %359 = tpu.matmul %355, %205, %cst_114 {dimension_numbers = #tpu.dot_dimension_numbers<[1], [0], [0], [1], [0, 0, 1, 1], [], []>} : vector<8x32xf32>, vector<32x128xf32>, vector<8x128xf32> -> vector<8x128xf32>
    %360 = arith.addf %358, %359 : vector<8x128xf32>
    %361 = arith.negf %360 : vector<8x128xf32>
    %362 = math.exp %361 : vector<8x128xf32>
    %cst_115 = arith.constant 1.000000e+00 : f32
    %363 = vector.broadcast %cst_115 : f32 to vector<8x128xf32>
    %364 = arith.addf %363, %362 : vector<8x128xf32>
    %365 = arith.divf %363, %364 : vector<8x128xf32>
    %366 = math.tanh %360 : vector<8x128xf32>
    %367 = vector.extract_strided_slice %365 {offsets = [0, 0], sizes = [8, 32], strides = [1, 1]} : vector<8x128xf32> to vector<8x32xf32>
    %368 = vector.extract_strided_slice %365 {offsets = [0, 32], sizes = [8, 32], strides = [1, 1]} : vector<8x128xf32> to vector<8x32xf32>
    %369 = vector.extract_strided_slice %366 {offsets = [0, 64], sizes = [8, 32], strides = [1, 1]} : vector<8x128xf32> to vector<8x32xf32>
    %370 = vector.extract_strided_slice %365 {offsets = [0, 96], sizes = [8, 32], strides = [1, 1]} : vector<8x128xf32> to vector<8x32xf32>
    %371 = arith.mulf %368, %353 : vector<8x32xf32>
    %372 = arith.mulf %367, %369 : vector<8x32xf32>
    %373 = arith.addf %371, %372 : vector<8x32xf32>
    %374 = math.tanh %373 : vector<8x32xf32>
    %375 = arith.mulf %370, %374 : vector<8x32xf32>
    %c8_i32_116 = arith.constant 8 : i32
    %c0_117 = arith.constant 0 : index
    %c0_118 = arith.constant 0 : index
    %376 = vector.load %arg7[%c0_117, %c0_118] : memref<32x128xf32, #tpu.memory_space<vmem>>, vector<32x128xf32>
    %cst_119 = arith.constant dense<0.000000e+00> : vector<8x128xf32>
    %377 = tpu.matmul %375, %376, %cst_119 {dimension_numbers = #tpu.dot_dimension_numbers<[1], [0], [0], [1], [0, 0, 1, 1], [], []>} : vector<8x32xf32>, vector<32x128xf32>, vector<8x128xf32> -> vector<8x128xf32>
    %c0_120 = arith.constant 0 : index
    %c0_121 = arith.constant 0 : index
    %378 = vector.load %arg8[%c0_120, %c0_121] : memref<1x128xf32, #tpu.memory_space<vmem>>, vector<1x128xf32>
    %379 = vector.broadcast %378 : vector<1x128xf32> to vector<8x128xf32>
    %380 = arith.addf %377, %379 : vector<8x128xf32>
    %c0_122 = arith.constant 0 : index
    %c0_123 = arith.constant 0 : index
    %381 = vector.load %arg9[%c0_122, %c0_123] : memref<8x128xf32, #tpu.memory_space<vmem>>, vector<8x128xf32>
    tpu.vector_store %arg9[%c0_122, %c0_123], %380 {strides = array<i32>} : memref<8x128xf32, #tpu.memory_space<vmem>>, vector<8x128xf32>,
    return
  }
}

</mosaic_0001>

<llo_original>
// kernel: tpu_custom_call.1
$region0: #{tpu_custom_call.1}
  #allocation0 [shape = 'u32[]', space=smem, size = 0x4, offset = 0x4, fixed_abs, tag = 'smem constant byte address 0x4 - core index']
  #allocation1 [shape = 'u32[72,128]{1,0:T(1,128)}', space=vmem, size = 0x9000, scoped, tag = 'internal scratch']
  #allocation2 [shape = 'f32[8,8,128]{2,1,0:T(8,128)}', space=vmem, size = 0x8000, scoped, tag = 'scratch operand']
  #allocation3 [shape = 'f32[8,8,32]{2,1,0:T(8,128)}', space=vmem, size = 0x8000, scoped, tag = 'scratch operand']
  %s0 = inlined_call_operand.vmem [shape: f32[8,8,4], index: 0, kind: input, shape index: {}]
  %s1 = inlined_call_operand.hbm [shape: f32[4,128], index: 1, kind: input, shape index: {}]
  %s2 = inlined_call_operand.vmem [shape: f32[32,128], index: 2, kind: input, shape index: {}]
  %s3 = inlined_call_operand.vmem [shape: f32[1,128], index: 3, kind: input, shape index: {}]
  %s4 = inlined_call_operand.vmem [shape: f32[32,128], index: 4, kind: input, shape index: {}]
  %s5 = inlined_call_operand.vmem [shape: f32[32,128], index: 5, kind: input, shape index: {}]
  %s6 = inlined_call_operand.vmem [shape: f32[1,128], index: 6, kind: input, shape index: {}]
  %s7 = inlined_call_operand.hbm [shape: f32[32,128], index: 7, kind: input, shape index: {}]
  %s8 = inlined_call_operand.vmem [shape: f32[1,128], index: 8, kind: input, shape index: {}]
  %s9 = inlined_call_operand.hbm [shape: f32[8,128], index: 9, kind: output, shape index: {}]
  %s10 = sld [smem:[#allocation0]]
  $region54: #{tpu_custom_call.1} parent=0
    _
  %s12 = ssub.s32 1, %s10
  %s13 = scalar_select 0, %s12, %s10
  $region1: #{tpu_custom_call.1} parent=0
    #allocation4 [shape = 'u8[2048]{0}', space=vmem, size = 0x800, scoped, tag = 'input window, operand 1, single buffered']
    #allocation5 [shape = 's32[1]{0}', space=sflag, size = 0x4, scoped, tag = 'scoped memory for tpu_custom_call.1']
    #allocation6 [shape = 's32[1]{0}', space=sflag, size = 0x4, scoped, tag = 'scoped memory for tpu_custom_call.1']
    #allocation7 [shape = 'u8[16384]{0}', space=vmem, size = 0x4000, scoped, tag = 'input window, operand 7, single buffered']
    #allocation8 [shape = 's32[1]{0}', space=sflag, size = 0x4, scoped, tag = 'scoped memory for tpu_custom_call.1']
    #allocation9 [shape = 'u8[4096]{0}', space=vmem, size = 0x1000, scoped, tag = 'output window, operand 0, single buffered']
    %14 = vsyncpa [#allocation5], 0
    %15 = vsyncpa [#allocation8], 0
    %16 = vsyncpa [#allocation6], 0
    // Predicated region
    $region2: #{tpu_custom_call.1} parent=1 // pred_check
      _
    $region3: #{tpu_custom_call.1} parent=1 // pred_check_branch
      %18 = sbr.rel (0) target = $region5
    $region4: #{tpu_custom_call.1} parent=1 // pred_region
      _
    $region5: #{tpu_custom_call.1} parent=1 // pred_fallthru
      _
    // Predicated region
    $region6: #{tpu_custom_call.1} parent=1 // pred_check
      _
    $region7: #{tpu_custom_call.1} parent=1 // pred_check_branch
      %20 = sbr.rel (0) target = $region9
    $region8: #{tpu_custom_call.1} parent=1 // pred_region
      %22 = vsyncadd [#allocation5], 0
      %s24 = sshll.u32 %s1, 4
      %s25 = int_to_ptr.hbm [resolvable:$true] %s24
      %s26 = sshll.u32 [#allocation4], 4
      %s27 = int_to_ptr.vmem [resolvable:$true] %s26
      %29 = dma.hbm_to_vmem [thread:$0]  %s25, 64, %s27, [#allocation5]
    $region9: #{tpu_custom_call.1} parent=1 // pred_fallthru
      _
    // Predicated region
    $region10: #{tpu_custom_call.1} parent=1 // pred_check
      _
    $region11: #{tpu_custom_call.1} parent=1 // pred_check_branch
      %31 = sbr.rel (0) target = $region13
    $region12: #{tpu_custom_call.1} parent=1 // pred_region
      _
    $region13: #{tpu_custom_call.1} parent=1 // pred_fallthru
      _
    // Predicated region
    $region14: #{tpu_custom_call.1} parent=1 // pred_check
      _
    $region15: #{tpu_custom_call.1} parent=1 // pred_check_branch
      %33 = sbr.rel (0) target = $region17
    $region16: #{tpu_custom_call.1} parent=1 // pred_region
      _
    $region17: #{tpu_custom_call.1} parent=1 // pred_fallthru
      _
    // Predicated region
    $region18: #{tpu_custom_call.1} parent=1 // pred_check
      _
    $region19: #{tpu_custom_call.1} parent=1 // pred_check_branch
      %35 = sbr.rel (0) target = $region21
    $region20: #{tpu_custom_call.1} parent=1 // pred_region
      _
    $region21: #{tpu_custom_call.1} parent=1 // pred_fallthru
      _
    // Predicated region
    $region22: #{tpu_custom_call.1} parent=1 // pred_check
      _
    $region23: #{tpu_custom_call.1} parent=1 // pred_check_branch
      %37 = sbr.rel (0) target = $region25
    $region24: #{tpu_custom_call.1} parent=1 // pred_region
      _
    $region25: #{tpu_custom_call.1} parent=1 // pred_fallthru
      _
    // Predicated region
    $region26: #{tpu_custom_call.1} parent=1 // pred_check
      _
    $region27: #{tpu_custom_call.1} parent=1 // pred_check_branch
      %39 = sbr.rel (0) target = $region29
    $region28: #{tpu_custom_call.1} parent=1 // pred_region
      _
    $region29: #{tpu_custom_call.1} parent=1 // pred_fallthru
      _
    // Predicated region
    $region30: #{tpu_custom_call.1} parent=1 // pred_check
      _
    $region31: #{tpu_custom_call.1} parent=1 // pred_check_branch
      %41 = sbr.rel (0) target = $region33
    $region32: #{tpu_custom_call.1} parent=1 // pred_region
      %43 = vsyncadd [#allocation8], 0
      %s44 = sshll.u32 %s7, 4
      %s45 = int_to_ptr.hbm [resolvable:$true] %s44
      %s46 = sshll.u32 [#allocation7], 4
      %s47 = int_to_ptr.vmem [resolvable:$true] %s46
      %52 = dma.hbm_to_vmem [thread:$0]  %s45, 512, %s47, [#allocation8], 128, 128, 8
    $region33: #{tpu_custom_call.1} parent=1 // pred_fallthru
      _
    // Predicated region
    $region34: #{tpu_custom_call.1} parent=1 // pred_check
      _
    $region35: #{tpu_custom_call.1} parent=1 // pred_check_branch
      %54 = sbr.rel (0) target = $region37
    $region36: #{tpu_custom_call.1} parent=1 // pred_region
      _
    $region37: #{tpu_custom_call.1} parent=1 // pred_fallthru
      _
    // Predicated region
    $region38: #{tpu_custom_call.1} parent=1 // pred_check
      _
    $region39: #{tpu_custom_call.1} parent=1 // pred_check_branch
      %56 = sbr.rel (0) target = $region41
    $region40: #{tpu_custom_call.1} parent=1 // pred_region
      %58 = dma.done [#allocation5], 64
    $region41: #{tpu_custom_call.1} parent=1 // pred_fallthru
      _
    // Predicated region
    $region42: #{tpu_custom_call.1} parent=1 // pred_check
      _
    $region43: #{tpu_custom_call.1} parent=1 // pred_check_branch
      %60 = sbr.rel (0) target = $region45
    $region44: #{tpu_custom_call.1} parent=1 // pred_region
      %62 = dma.done [#allocation8], 512
    $region45: #{tpu_custom_call.1} parent=1 // pred_fallthru
      _
    %v63 = vld [vmem:[#allocation4] sm:$0xf]
    %v64 = vld [vmem:[%s2] sm:$0xff]
    %v65 = vld [vmem:[%s2 + $0x8] sm:$0xff]
    %v66 = vld [vmem:[%s2 + $0x10] sm:$0xff]
    %v67 = vld [vmem:[%s2 + $0x18] sm:$0xff]
    %v68 = vld [vmem:[%s3] sm:$0x1]
    %v69 = vld [vmem:[%s0] sm:$0xff]
    %v70 = vld [vmem:[%s0 + $0x8] sm:$0xff]
    %v71 = vld [vmem:[%s0 + $0x10] sm:$0xff]
    %v72 = vld [vmem:[%s0 + $0x18] sm:$0xff]
    %v73 = vld [vmem:[%s0 + $0x20] sm:$0xff]
    %v74 = vld [vmem:[%s0 + $0x28] sm:$0xff]
    %v75 = vld [vmem:[%s0 + $0x30] sm:$0xff]
    %v76 = vld [vmem:[%s0 + $0x38] sm:$0xff]
    %v78 = vperm.slane %v68, 0
    %vm80 = vcmask 31744
    %v82 = vsel %vm80, %v69, 0
    %v85 = vsel %vm80, %v70, 0
    %v88 = vsel %vm80, %v71, 0
    %v91 = vsel %vm80, %v72, 0
    %v94 = vsel %vm80, %v73, 0
    %v97 = vsel %vm80, %v74, 0
    %v100 = vsel %vm80, %v75, 0
    %v103 = vsel %vm80, %v76, 0
    %vm105 = vcmask 1043456
    %v107 = vsel %vm105, %v63, 0
    %109 = vmatpush.msra.mxu0 0.0
    %110 = vmatpush.msra.mxu0 0.0
    %111 = vmatpush.msra.mxu0 0.0
    %112 = vmatpush.msra.mxu0 0.0
    %113 = vmatpush.msra.mxu0 0.0
    %114 = vmatpush.msra.mxu0 0.0
    %115 = vmatpush.msra.mxu0 0.0
    %116 = vmatpush.msra.mxu0 0.0
    %117 = vmatpush.msra.mxu0 0.0
    %118 = vmatpush.msra.mxu0 0.0
    %119 = vmatpush.msra.mxu0 0.0
    %120 = vmatpush.msra.mxu0 0.0
    %121 = vmatpush.msra.mxu0 0.0
    %122 = vmatpush.msra.mxu0 0.0
    %123 = vmatpush.msra.mxu0 0.0
    %124 = vmatpush.msra.mxu0 %v107
    %125 = vmatmul.f32.gmra.mxu0 %v82
    %v126 = vpop.f32.mrf.mxu0
    %v127 = vadd.f32 %v78, %v126
    %128 = vmatmul.f32.gmra.mxu0 %v85
    %v129 = vpop.f32.mrf.mxu0
    %v130 = vadd.f32 %v78, %v129
    %131 = vmatmul.f32.gmra.mxu0 %v88
    %v132 = vpop.f32.mrf.mxu0
    %v133 = vadd.f32 %v78, %v132
    %134 = vmatmul.f32.gmra.mxu0 %v91
    %v135 = vpop.f32.mrf.mxu0
    %v136 = vadd.f32 %v78, %v135
    %137 = vmatmul.f32.gmra.mxu0 %v94
    %v138 = vpop.f32.mrf.mxu0
    %v139 = vadd.f32 %v78, %v138
    %140 = vmatmul.f32.gmra.mxu0 %v97
    %v141 = vpop.f32.mrf.mxu0
    %v142 = vadd.f32 %v78, %v141
    %143 = vmatmul.f32.gmra.mxu0 %v100
    %v144 = vpop.f32.mrf.mxu0
    %v145 = vadd.f32 %v78, %v144
    %146 = vmatmul.f32.gmra.mxu0 %v103
    %v147 = vpop.f32.mrf.mxu0
    %v148 = vadd.f32 %v78, %v147
    %149 = vdwg.mxu0
    %150 = vst [vmem:[#allocation2] sm:$0xff] %v127
    %151 = vst [vmem:[#allocation2 + $0x8] sm:$0xff] %v130
    %152 = vst [vmem:[#allocation2 + $0x10] sm:$0xff] %v133
    %153 = vst [vmem:[#allocation2 + $0x18] sm:$0xff] %v136
    %154 = vst [vmem:[#allocation2 + $0x20] sm:$0xff] %v139
    %155 = vst [vmem:[#allocation2 + $0x28] sm:$0xff] %v142
    %156 = vst [vmem:[#allocation2 + $0x30] sm:$0xff] %v145
    %157 = vst [vmem:[#allocation2 + $0x38] sm:$0xff] %v148
    %v158 = vld [vmem:[#allocation2] sm:$0xff]
    %vm159 = vcmask 261120
    %v161 = vsel %vm159, 0.0, 0
    %163 = vmatpush.msra.mxu0 0.0
    %164 = vmatpush.msra.mxu0 0.0
    %165 = vmatpush.msra.mxu0 0.0
    %166 = vmatpush.msra.mxu0 0.0
    %167 = vmatpush.msra.mxu0 0.0
    %168 = vmatpush.msra.mxu0 0.0
    %169 = vmatpush.msra.mxu0 0.0
    %170 = vmatpush.msra.mxu0 0.0
    %171 = vmatpush.msra.mxu0 0.0
    %172 = vmatpush.msra.mxu0 0.0
    %173 = vmatpush.msra.mxu0 0.0
    %174 = vmatpush.msra.mxu0 0.0
    %175 = vmatpush.msra.mxu0 %v67
    %176 = vmatpush.msra.mxu0 %v66
    %177 = vmatpush.msra.mxu0 %v65
    %178 = vmatpush.msra.mxu0 %v64
    %179 = vmatmul.f32.gmra.mxu0 %v161
    %v180 = vpop.f32.mrf.mxu0
    %v181 = vadd.f32 0.0, %v180
    %182 = vdwg.mxu0
    %v183 = vadd.f32 %v158, %v181
    %v184 = vxor.u32 %v183, 2147483648
    %v185 = vmul.f32 %v184, 1.442695
    %v186 = vpow.pop %v185
    %v187 = vadd.f32 %v186, 1.0
    %v188 = vrcp.pop %v187
    %v189 = vmul.f32 %v187, %v188
    %v190 = vsub.f32 1.0, %v189
    %v191 = vmul.f32 %v188, %v190
    %v192 = vadd.f32 %v188, %v191
    %vm193 = vweird.f32 %v187
    %vm194 = vweird.f32 %v188
    %vm195 = vmor %vm193, %vm194
    %v196 = vsel %vm195, %v188, %v192
    %v197 = vand.u32 2147483647, %v187
    %vm198 = vcmp.eq.f32.partialorder %v197, 8.507059e+37
    %v199 = vand.u32 %v187, 2147483648
    %v200 = vor.u32 1.1754944e-38, %v199
    %v201 = vsel %vm198, %v200, %v196
    %v202 = vmul.f32 1.0, %v201
    %v203 = vtanh.pop %v183
    %v204 = vmul.f32 %v202, 0.0
    %206 = vrot.lane.b32.xlu0 %v203, 64
    %v207 = vpop.permute.xlu0 %206
    %v209 = vmul.f32 %v202, %v207
    %211 = vrot.lane.b32.xlu0 %v209, 32
    %v212 = vpop.permute.xlu0 %211
    %v214 = vadd.f32 %v204, %v212
    %v215 = vtanh.pop %v214
    %217 = vrot.lane.b32.xlu0 %v215, 64
    %v218 = vpop.permute.xlu0 %217
    %v220 = vmul.f32 %v202, %v218
    %222 = vrot.lane.b32.xlu0 %v220, 32
    %v223 = vpop.permute.xlu0 %222
    %225 = vst.msk [vmem:[#allocation3] sm:$0xff] %vm159, %v223
    %s226 = scalar_lea.vmem [#allocation2], 8
    %v227 = vld [vmem:[%s226] sm:$0xff]
    %v228 = vsel %vm159, %v223, 0
    %230 = vmatpush.msra.mxu0 0.0
    %231 = vmatpush.msra.mxu0 0.0
    %232 = vmatpush.msra.mxu0 0.0
    %233 = vmatpush.msra.mxu0 0.0
    %234 = vmatpush.msra.mxu0 0.0
    %235 = vmatpush.msra.mxu0 0.0
    %236 = vmatpush.msra.mxu0 0.0
    %237 = vmatpush.msra.mxu0 0.0
    %238 = vmatpush.msra.mxu0 0.0
    %239 = vmatpush.msra.mxu0 0.0
    %240 = vmatpush.msra.mxu0 0.0
    %241 = vmatpush.msra.mxu0 0.0
    %242 = vmatpush.msra.mxu0 %v67
    %243 = vmatpush.msra.mxu0 %v66
    %244 = vmatpush.msra.mxu0 %v65
    %245 = vmatpush.msra.mxu0 %v64
    %246 = vmatmul.f32.gmra.mxu0 %v228
    %v247 = vpop.f32.mrf.mxu0
    %v248 = vadd.f32 0.0, %v247
    %249 = vdwg.mxu0
    %v250 = vadd.f32 %v227, %v248
    %v251 = vxor.u32 %v250, 2147483648
    %v252 = vmul.f32 %v251, 1.442695
    %v253 = vpow.pop %v252
    %v254 = vadd.f32 %v253, 1.0
    %v255 = vrcp.pop %v254
    %v256 = vmul.f32 %v254, %v255
    %v257 = vsub.f32 1.0, %v256
    %v258 = vmul.f32 %v255, %v257
    %v259 = vadd.f32 %v255, %v258
    %vm260 = vweird.f32 %v254
    %vm261 = vweird.f32 %v255
    %vm262 = vmor %vm260, %vm261
    %v263 = vsel %vm262, %v255, %v259
    %v264 = vand.u32 2147483647, %v254
    %vm265 = vcmp.eq.f32.partialorder %v264, 8.507059e+37
    %v266 = vand.u32 %v254, 2147483648
    %v267 = vor.u32 1.1754944e-38, %v266
    %v268 = vsel %vm265, %v267, %v263
    %v269 = vmul.f32 1.0, %v268
    %v270 = vtanh.pop %v250
    %v271 = vmul.f32 %v269, %v214
    %273 = vrot.lane.b32.xlu0 %v270, 64
    %v274 = vpop.permute.xlu0 %273
    %v276 = vmul.f32 %v269, %v274
    %278 = vrot.lane.b32.xlu0 %v276, 32
    %v279 = vpop.permute.xlu0 %278
    %v281 = vadd.f32 %v271, %v279
    %v282 = vtanh.pop %v281
    %284 = vrot.lane.b32.xlu0 %v282, 64
    %v285 = vpop.permute.xlu0 %284
    %v287 = vmul.f32 %v269, %v285
    %289 = vrot.lane.b32.xlu0 %v287, 32
    %v290 = vpop.permute.xlu0 %289
    %s292 = scalar_lea.vmem [#allocation3], 8
    %293 = vst.msk [vmem:[%s292] sm:$0xff] %vm159, %v290
    %s294 = scalar_lea.vmem [#allocation2], 16
    %v295 = vld [vmem:[%s294] sm:$0xff]
    %v296 = vsel %vm159, %v290, 0
    %298 = vmatpush.msra.mxu0 0.0
    %299 = vmatpush.msra.mxu0 0.0
    %300 = vmatpush.msra.mxu0 0.0
    %301 = vmatpush.msra.mxu0 0.0
    %302 = vmatpush.msra.mxu0 0.0
    %303 = vmatpush.msra.mxu0 0.0
    %304 = vmatpush.msra.mxu0 0.0
    %305 = vmatpush.msra.mxu0 0.0
    %306 = vmatpush.msra.mxu0 0.0
    %307 = vmatpush.msra.mxu0 0.0
    %308 = vmatpush.msra.mxu0 0.0
    %309 = vmatpush.msra.mxu0 0.0
    %310 = vmatpush.msra.mxu0 %v67
    %311 = vmatpush.msra.mxu0 %v66
    %312 = vmatpush.msra.mxu0 %v65
    %313 = vmatpush.msra.mxu0 %v64
    %314 = vmatmul.f32.gmra.mxu0 %v296
    %v315 = vpop.f32.mrf.mxu0
    %v316 = vadd.f32 0.0, %v315
    %317 = vdwg.mxu0
    %v318 = vadd.f32 %v295, %v316
    %v319 = vxor.u32 %v318, 2147483648
    %v320 = vmul.f32 %v319, 1.442695
    %v321 = vpow.pop %v320
    %v322 = vadd.f32 %v321, 1.0
    %v323 = vrcp.pop %v322
    %v324 = vmul.f32 %v322, %v323
    %v325 = vsub.f32 1.0, %v324
    %v326 = vmul.f32 %v323, %v325
    %v327 = vadd.f32 %v323, %v326
    %vm328 = vweird.f32 %v322
    %vm329 = vweird.f32 %v323
    %vm330 = vmor %vm328, %vm329
    %v331 = vsel %vm330, %v323, %v327
    %v332 = vand.u32 2147483647, %v322
    %vm333 = vcmp.eq.f32.partialorder %v332, 8.507059e+37
    %v334 = vand.u32 %v322, 2147483648
    %v335 = vor.u32 1.1754944e-38, %v334
    %v336 = vsel %vm333, %v335, %v331
    %v337 = vmul.f32 1.0, %v336
    %v338 = vtanh.pop %v318
    %v339 = vmul.f32 %v337, %v281
    %341 = vrot.lane.b32.xlu0 %v338, 64
    %v342 = vpop.permute.xlu0 %341
    %v344 = vmul.f32 %v337, %v342
    %346 = vrot.lane.b32.xlu0 %v344, 32
    %v347 = vpop.permute.xlu0 %346
    %v349 = vadd.f32 %v339, %v347
    %v350 = vtanh.pop %v349
    %352 = vrot.lane.b32.xlu0 %v350, 64
    %v353 = vpop.permute.xlu0 %352
    %v355 = vmul.f32 %v337, %v353
    %357 = vrot.lane.b32.xlu0 %v355, 32
    %v358 = vpop.permute.xlu0 %357
    %s360 = scalar_lea.vmem [#allocation3], 16
    %361 = vst.msk [vmem:[%s360] sm:$0xff] %vm159, %v358
    %s362 = scalar_lea.vmem [#allocation2], 24
    %v363 = vld [vmem:[%s362] sm:$0xff]
    %v364 = vsel %vm159, %v358, 0
    %366 = vmatpush.msra.mxu0 0.0
    %367 = vmatpush.msra.mxu0 0.0
    %368 = vmatpush.msra.mxu0 0.0
    %369 = vmatpush.msra.mxu0 0.0
    %370 = vmatpush.msra.mxu0 0.0
    %371 = vmatpush.msra.mxu0 0.0
    %372 = vmatpush.msra.mxu0 0.0
    %373 = vmatpush.msra.mxu0 0.0
    %374 = vmatpush.msra.mxu0 0.0
    %375 = vmatpush.msra.mxu0 0.0
    %376 = vmatpush.msra.mxu0 0.0
    %377 = vmatpush.msra.mxu0 0.0
    %378 = vmatpush.msra.mxu0 %v67
    %379 = vmatpush.msra.mxu0 %v66
    %380 = vmatpush.msra.mxu0 %v65
    %381 = vmatpush.msra.mxu0 %v64
    %382 = vmatmul.f32.gmra.mxu0 %v364
    %v383 = vpop.f32.mrf.mxu0
    %v384 = vadd.f32 0.0, %v383
    %385 = vdwg.mxu0
    %v386 = vadd.f32 %v363, %v384
    %v387 = vxor.u32 %v386, 2147483648
    %v388 = vmul.f32 %v387, 1.442695
    %v389 = vpow.pop %v388
    %v390 = vadd.f32 %v389, 1.0
    %v391 = vrcp.pop %v390
    %v392 = vmul.f32 %v390, %v391
    %v393 = vsub.f32 1.0, %v392
    %v394 = vmul.f32 %v391, %v393
    %v395 = vadd.f32 %v391, %v394
    %vm396 = vweird.f32 %v390
    %vm397 = vweird.f32 %v391
    %vm398 = vmor %vm396, %vm397
    %v399 = vsel %vm398, %v391, %v395
    %v400 = vand.u32 2147483647, %v390
    %vm401 = vcmp.eq.f32.partialorder %v400, 8.507059e+37
    %v402 = vand.u32 %v390, 2147483648
    %v403 = vor.u32 1.1754944e-38, %v402
    %v404 = vsel %vm401, %v403, %v399
    %v405 = vmul.f32 1.0, %v404
    %v406 = vtanh.pop %v386
    %v407 = vmul.f32 %v405, %v349
    %409 = vrot.lane.b32.xlu0 %v406, 64
    %v410 = vpop.permute.xlu0 %409
    %v412 = vmul.f32 %v405, %v410
    %414 = vrot.lane.b32.xlu0 %v412, 32
    %v415 = vpop.permute.xlu0 %414
    %v417 = vadd.f32 %v407, %v415
    %v418 = vtanh.pop %v417
    %420 = vrot.lane.b32.xlu0 %v418, 64
    %v421 = vpop.permute.xlu0 %420
    %v423 = vmul.f32 %v405, %v421
    %425 = vrot.lane.b32.xlu0 %v423, 32
    %v426 = vpop.permute.xlu0 %425
    %s428 = scalar_lea.vmem [#allocation3], 24
    %429 = vst.msk [vmem:[%s428] sm:$0xff] %vm159, %v426
    %s430 = scalar_lea.vmem [#allocation2], 32
    %v431 = vld [vmem:[%s430] sm:$0xff]
    %v432 = vsel %vm159, %v426, 0
    %434 = vmatpush.msra.mxu0 0.0
    %435 = vmatpush.msra.mxu0 0.0
    %436 = vmatpush.msra.mxu0 0.0
    %437 = vmatpush.msra.mxu0 0.0
    %438 = vmatpush.msra.mxu0 0.0
    %439 = vmatpush.msra.mxu0 0.0
    %440 = vmatpush.msra.mxu0 0.0
    %441 = vmatpush.msra.mxu0 0.0
    %442 = vmatpush.msra.mxu0 0.0
    %443 = vmatpush.msra.mxu0 0.0
    %444 = vmatpush.msra.mxu0 0.0
    %445 = vmatpush.msra.mxu0 0.0
    %446 = vmatpush.msra.mxu0 %v67
    %447 = vmatpush.msra.mxu0 %v66
    %448 = vmatpush.msra.mxu0 %v65
    %449 = vmatpush.msra.mxu0 %v64
    %450 = vmatmul.f32.gmra.mxu0 %v432
    %v451 = vpop.f32.mrf.mxu0
    %v452 = vadd.f32 0.0, %v451
    %453 = vdwg.mxu0
    %v454 = vadd.f32 %v431, %v452
    %v455 = vxor.u32 %v454, 2147483648
    %v456 = vmul.f32 %v455, 1.442695
    %v457 = vpow.pop %v456
    %v458 = vadd.f32 %v457, 1.0
    %v459 = vrcp.pop %v458
    %v460 = vmul.f32 %v458, %v459
    %v461 = vsub.f32 1.0, %v460
    %v462 = vmul.f32 %v459, %v461
    %v463 = vadd.f32 %v459, %v462
    %vm464 = vweird.f32 %v458
    %vm465 = vweird.f32 %v459
    %vm466 = vmor %vm464, %vm465
    %v467 = vsel %vm466, %v459, %v463
    %v468 = vand.u32 2147483647, %v458
    %vm469 = vcmp.eq.f32.partialorder %v468, 8.507059e+37
    %v470 = vand.u32 %v458, 2147483648
    %v471 = vor.u32 1.1754944e-38, %v470
    %v472 = vsel %vm469, %v471, %v467
    %v473 = vmul.f32 1.0, %v472
    %v474 = vtanh.pop %v454
    %v475 = vmul.f32 %v473, %v417
    %477 = vrot.lane.b32.xlu0 %v474, 64
    %v478 = vpop.permute.xlu0 %477
    %v480 = vmul.f32 %v473, %v478
    %482 = vrot.lane.b32.xlu0 %v480, 32
    %v483 = vpop.permute.xlu0 %482
    %v485 = vadd.f32 %v475, %v483
    %v486 = vtanh.pop %v485
    %488 = vrot.lane.b32.xlu0 %v486, 64
    %v489 = vpop.permute.xlu0 %488
    %v491 = vmul.f32 %v473, %v489
    %493 = vrot.lane.b32.xlu0 %v491, 32
    %v494 = vpop.permute.xlu0 %493
    %s496 = scalar_lea.vmem [#allocation3], 32
    %497 = vst.msk [vmem:[%s496] sm:$0xff] %vm159, %v494
    %s498 = scalar_lea.vmem [#allocation2], 40
    %v499 = vld [vmem:[%s498] sm:$0xff]
    %v500 = vsel %vm159, %v494, 0
    %502 = vmatpush.msra.mxu0 0.0
    %503 = vmatpush.msra.mxu0 0.0
    %504 = vmatpush.msra.mxu0 0.0
    %505 = vmatpush.msra.mxu0 0.0
    %506 = vmatpush.msra.mxu0 0.0
    %507 = vmatpush.msra.mxu0 0.0
    %508 = vmatpush.msra.mxu0 0.0
    %509 = vmatpush.msra.mxu0 0.0
    %510 = vmatpush.msra.mxu0 0.0
    %511 = vmatpush.msra.mxu0 0.0
    %512 = vmatpush.msra.mxu0 0.0
    %513 = vmatpush.msra.mxu0 0.0
    %514 = vmatpush.msra.mxu0 %v67
    %515 = vmatpush.msra.mxu0 %v66
    %516 = vmatpush.msra.mxu0 %v65
    %517 = vmatpush.msra.mxu0 %v64
    %518 = vmatmul.f32.gmra.mxu0 %v500
    %v519 = vpop.f32.mrf.mxu0
    %v520 = vadd.f32 0.0, %v519
    %521 = vdwg.mxu0
    %v522 = vadd.f32 %v499, %v520
    %v523 = vxor.u32 %v522, 2147483648
    %v524 = vmul.f32 %v523, 1.442695
    %v525 = vpow.pop %v524
    %v526 = vadd.f32 %v525, 1.0
    %v527 = vrcp.pop %v526
    %v528 = vmul.f32 %v526, %v527
    %v529 = vsub.f32 1.0, %v528
    %v530 = vmul.f32 %v527, %v529
    %v531 = vadd.f32 %v527, %v530
    %vm532 = vweird.f32 %v526
    %vm533 = vweird.f32 %v527
    %vm534 = vmor %vm532, %vm533
    %v535 = vsel %vm534, %v527, %v531
    %v536 = vand.u32 2147483647, %v526
    %vm537 = vcmp.eq.f32.partialorder %v536, 8.507059e+37
    %v538 = vand.u32 %v526, 2147483648
    %v539 = vor.u32 1.1754944e-38, %v538
    %v540 = vsel %vm537, %v539, %v535
    %v541 = vmul.f32 1.0, %v540
    %v542 = vtanh.pop %v522
    %v543 = vmul.f32 %v541, %v485
    %545 = vrot.lane.b32.xlu0 %v542, 64
    %v546 = vpop.permute.xlu0 %545
    %v548 = vmul.f32 %v541, %v546
    %550 = vrot.lane.b32.xlu0 %v548, 32
    %v551 = vpop.permute.xlu0 %550
    %v553 = vadd.f32 %v543, %v551
    %v554 = vtanh.pop %v553
    %556 = vrot.lane.b32.xlu0 %v554, 64
    %v557 = vpop.permute.xlu0 %556
    %v559 = vmul.f32 %v541, %v557
    %561 = vrot.lane.b32.xlu0 %v559, 32
    %v562 = vpop.permute.xlu0 %561
    %s564 = scalar_lea.vmem [#allocation3], 40
    %565 = vst.msk [vmem:[%s564] sm:$0xff] %vm159, %v562
    %s566 = scalar_lea.vmem [#allocation2], 48
    %v567 = vld [vmem:[%s566] sm:$0xff]
    %v568 = vsel %vm159, %v562, 0
    %570 = vmatpush.msra.mxu0 0.0
    %571 = vmatpush.msra.mxu0 0.0
    %572 = vmatpush.msra.mxu0 0.0
    %573 = vmatpush.msra.mxu0 0.0
    %574 = vmatpush.msra.mxu0 0.0
    %575 = vmatpush.msra.mxu0 0.0
    %576 = vmatpush.msra.mxu0 0.0
    %577 = vmatpush.msra.mxu0 0.0
    %578 = vmatpush.msra.mxu0 0.0
    %579 = vmatpush.msra.mxu0 0.0
    %580 = vmatpush.msra.mxu0 0.0
    %581 = vmatpush.msra.mxu0 0.0
    %582 = vmatpush.msra.mxu0 %v67
    %583 = vmatpush.msra.mxu0 %v66
    %584 = vmatpush.msra.mxu0 %v65
    %585 = vmatpush.msra.mxu0 %v64
    %586 = vmatmul.f32.gmra.mxu0 %v568
    %v587 = vpop.f32.mrf.mxu0
    %v588 = vadd.f32 0.0, %v587
    %589 = vdwg.mxu0
    %v590 = vadd.f32 %v567, %v588
    %v591 = vxor.u32 %v590, 2147483648
    %v592 = vmul.f32 %v591, 1.442695
    %v593 = vpow.pop %v592
    %v594 = vadd.f32 %v593, 1.0
    %v595 = vrcp.pop %v594
    %v596 = vmul.f32 %v594, %v595
    %v597 = vsub.f32 1.0, %v596
    %v598 = vmul.f32 %v595, %v597
    %v599 = vadd.f32 %v595, %v598
    %vm600 = vweird.f32 %v594
    %vm601 = vweird.f32 %v595
    %vm602 = vmor %vm600, %vm601
    %v603 = vsel %vm602, %v595, %v599
    %v604 = vand.u32 2147483647, %v594
    %vm605 = vcmp.eq.f32.partialorder %v604, 8.507059e+37
    %v606 = vand.u32 %v594, 2147483648
    %v607 = vor.u32 1.1754944e-38, %v606
    %v608 = vsel %vm605, %v607, %v603
    %v609 = vmul.f32 1.0, %v608
    %v610 = vtanh.pop %v590
    %v611 = vmul.f32 %v609, %v553
    %613 = vrot.lane.b32.xlu0 %v610, 64
    %v614 = vpop.permute.xlu0 %613
    %v616 = vmul.f32 %v609, %v614
    %618 = vrot.lane.b32.xlu0 %v616, 32
    %v619 = vpop.permute.xlu0 %618
    %v621 = vadd.f32 %v611, %v619
    %v622 = vtanh.pop %v621
    %624 = vrot.lane.b32.xlu0 %v622, 64
    %v625 = vpop.permute.xlu0 %624
    %v627 = vmul.f32 %v609, %v625
    %629 = vrot.lane.b32.xlu0 %v627, 32
    %v630 = vpop.permute.xlu0 %629
    %s632 = scalar_lea.vmem [#allocation3], 48
    %633 = vst.msk [vmem:[%s632] sm:$0xff] %vm159, %v630
    %s634 = scalar_lea.vmem [#allocation2], 56
    %v635 = vld [vmem:[%s634] sm:$0xff]
    %v636 = vsel %vm159, %v630, 0
    %638 = vmatpush.msra.mxu0 0.0
    %639 = vmatpush.msra.mxu0 0.0
    %640 = vmatpush.msra.mxu0 0.0
    %641 = vmatpush.msra.mxu0 0.0
    %642 = vmatpush.msra.mxu0 0.0
    %643 = vmatpush.msra.mxu0 0.0
    %644 = vmatpush.msra.mxu0 0.0
    %645 = vmatpush.msra.mxu0 0.0
    %646 = vmatpush.msra.mxu0 0.0
    %647 = vmatpush.msra.mxu0 0.0
    %648 = vmatpush.msra.mxu0 0.0
    %649 = vmatpush.msra.mxu0 0.0
    %650 = vmatpush.msra.mxu0 %v67
    %651 = vmatpush.msra.mxu0 %v66
    %652 = vmatpush.msra.mxu0 %v65
    %653 = vmatpush.msra.mxu0 %v64
    %654 = vmatmul.f32.gmra.mxu0 %v636
    %v655 = vpop.f32.mrf.mxu0
    %v656 = vadd.f32 0.0, %v655
    %657 = vdwg.mxu0
    %v658 = vadd.f32 %v635, %v656
    %v659 = vxor.u32 %v658, 2147483648
    %v660 = vmul.f32 %v659, 1.442695
    %v661 = vpow.pop %v660
    %v662 = vadd.f32 %v661, 1.0
    %v663 = vrcp.pop %v662
    %v664 = vmul.f32 %v662, %v663
    %v665 = vsub.f32 1.0, %v664
    %v666 = vmul.f32 %v663, %v665
    %v667 = vadd.f32 %v663, %v666
    %vm668 = vweird.f32 %v662
    %vm669 = vweird.f32 %v663
    %vm670 = vmor %vm668, %vm669
    %v671 = vsel %vm670, %v663, %v667
    %v672 = vand.u32 2147483647, %v662
    %vm673 = vcmp.eq.f32.partialorder %v672, 8.507059e+37
    %v674 = vand.u32 %v662, 2147483648
    %v675 = vor.u32 1.1754944e-38, %v674
    %v676 = vsel %vm673, %v675, %v671
    %v677 = vmul.f32 1.0, %v676
    %v678 = vtanh.pop %v658
    %v679 = vmul.f32 %v677, %v621
    %681 = vrot.lane.b32.xlu0 %v678, 64
    %v682 = vpop.permute.xlu0 %681
    %v684 = vmul.f32 %v677, %v682
    %686 = vrot.lane.b32.xlu0 %v684, 32
    %v687 = vpop.permute.xlu0 %686
    %v689 = vadd.f32 %v679, %v687
    %v690 = vtanh.pop %v689
    %692 = vrot.lane.b32.xlu0 %v690, 64
    %v693 = vpop.permute.xlu0 %692
    %v695 = vmul.f32 %v677, %v693
    %697 = vrot.lane.b32.xlu0 %v695, 32
    %v698 = vpop.permute.xlu0 %697
    %s700 = scalar_lea.vmem [#allocation3], 56
    %701 = vst.msk [vmem:[%s700] sm:$0xff] %vm159, %v698
    %v702 = vld [vmem:[%s4] sm:$0xff]
    %v703 = vld [vmem:[%s4 + $0x8] sm:$0xff]
    %v704 = vld [vmem:[%s4 + $0x10] sm:$0xff]
    %v705 = vld [vmem:[%s4 + $0x18] sm:$0xff]
    %v706 = vld [vmem:[%s5] sm:$0xff]
    %v707 = vld [vmem:[%s5 + $0x8] sm:$0xff]
    %v708 = vld [vmem:[%s5 + $0x10] sm:$0xff]
    %v709 = vld [vmem:[%s5 + $0x18] sm:$0xff]
    %v710 = vld [vmem:[%s6] sm:$0x1]
    %v711 = vld [vmem:[#allocation3] sm:$0xff]
    %v712 = vld [vmem:[#allocation3 + $0x8] sm:$0xff]
    %v713 = vld [vmem:[#allocation3 + $0x10] sm:$0xff]
    %v714 = vld [vmem:[#allocation3 + $0x18] sm:$0xff]
    %v715 = vld [vmem:[#allocation3 + $0x20] sm:$0xff]
    %v716 = vld [vmem:[#allocation3 + $0x28] sm:$0xff]
    %v717 = vld [vmem:[#allocation3 + $0x30] sm:$0xff]
    %v718 = vld [vmem:[#allocation3 + $0x38] sm:$0xff]
    %v720 = vperm.slane %v710, 0
    %v723 = vsel %vm159, %v711, 0
    %v726 = vsel %vm159, %v712, 0
    %v729 = vsel %vm159, %v713, 0
    %v732 = vsel %vm159, %v714, 0
    %v735 = vsel %vm159, %v715, 0
    %v738 = vsel %vm159, %v716, 0
    %v741 = vsel %vm159, %v717, 0
    %v744 = vsel %vm159, %v718, 0
    %746 = vmatpush.msra.mxu0 0.0
    %747 = vmatpush.msra.mxu0 0.0
    %748 = vmatpush.msra.mxu0 0.0
    %749 = vmatpush.msra.mxu0 0.0
    %750 = vmatpush.msra.mxu0 0.0
    %751 = vmatpush.msra.mxu0 0.0
    %752 = vmatpush.msra.mxu0 0.0
    %753 = vmatpush.msra.mxu0 0.0
    %754 = vmatpush.msra.mxu0 0.0
    %755 = vmatpush.msra.mxu0 0.0
    %756 = vmatpush.msra.mxu0 0.0
    %757 = vmatpush.msra.mxu0 0.0
    %758 = vmatpush.msra.mxu0 %v705
    %759 = vmatpush.msra.mxu0 %v704
    %760 = vmatpush.msra.mxu0 %v703
    %761 = vmatpush.msra.mxu0 %v702
    %762 = vmatmul.f32.gmra.mxu0 %v723
    %v763 = vpop.f32.mrf.mxu0
    %v764 = vadd.f32 %v720, %v763
    %765 = vmatmul.f32.gmra.mxu0 %v726
    %v766 = vpop.f32.mrf.mxu0
    %v767 = vadd.f32 %v720, %v766
    %768 = vmatmul.f32.gmra.mxu0 %v729
    %v769 = vpop.f32.mrf.mxu0
    %v770 = vadd.f32 %v720, %v769
    %771 = vmatmul.f32.gmra.mxu0 %v732
    %v772 = vpop.f32.mrf.mxu0
    %v773 = vadd.f32 %v720, %v772
    %774 = vmatmul.f32.gmra.mxu0 %v735
    %v775 = vpop.f32.mrf.mxu0
    %v776 = vadd.f32 %v720, %v775
    %777 = vmatmul.f32.gmra.mxu0 %v738
    %v778 = vpop.f32.mrf.mxu0
    %v779 = vadd.f32 %v720, %v778
    %780 = vmatmul.f32.gmra.mxu0 %v741
    %v781 = vpop.f32.mrf.mxu0
    %v782 = vadd.f32 %v720, %v781
    %783 = vmatmul.f32.gmra.mxu0 %v744
    %v784 = vpop.f32.mrf.mxu0
    %v785 = vadd.f32 %v720, %v784
    %786 = vdwg.mxu0
    %787 = vst [vmem:[#allocation2] sm:$0xff] %v764
    %788 = vst [vmem:[#allocation2 + $0x8] sm:$0xff] %v767
    %789 = vst [vmem:[#allocation2 + $0x10] sm:$0xff] %v770
    %790 = vst [vmem:[#allocation2 + $0x18] sm:$0xff] %v773
    %791 = vst [vmem:[#allocation2 + $0x20] sm:$0xff] %v776
    %792 = vst [vmem:[#allocation2 + $0x28] sm:$0xff] %v779
    %793 = vst [vmem:[#allocation2 + $0x30] sm:$0xff] %v782
    %794 = vst [vmem:[#allocation2 + $0x38] sm:$0xff] %v785
    %v795 = vld [vmem:[#allocation2] sm:$0xff]
    %796 = vmatpush.msra.mxu0 0.0
    %797 = vmatpush.msra.mxu0 0.0
    %798 = vmatpush.msra.mxu0 0.0
    %799 = vmatpush.msra.mxu0 0.0
    %800 = vmatpush.msra.mxu0 0.0
    %801 = vmatpush.msra.mxu0 0.0
    %802 = vmatpush.msra.mxu0 0.0
    %803 = vmatpush.msra.mxu0 0.0
    %804 = vmatpush.msra.mxu0 0.0
    %805 = vmatpush.msra.mxu0 0.0
    %806 = vmatpush.msra.mxu0 0.0
    %807 = vmatpush.msra.mxu0 0.0
    %808 = vmatpush.msra.mxu0 %v709
    %809 = vmatpush.msra.mxu0 %v708
    %810 = vmatpush.msra.mxu0 %v707
    %811 = vmatpush.msra.mxu0 %v706
    %812 = vmatmul.f32.gmra.mxu0 %v161
    %v813 = vpop.f32.mrf.mxu0
    %v814 = vadd.f32 0.0, %v813
    %815 = vdwg.mxu0
    %v816 = vadd.f32 %v795, %v814
    %v817 = vxor.u32 %v816, 2147483648
    %v818 = vmul.f32 %v817, 1.442695
    %v819 = vpow.pop %v818
    %v820 = vadd.f32 %v819, 1.0
    %v821 = vrcp.pop %v820
    %v822 = vmul.f32 %v820, %v821
    %v823 = vsub.f32 1.0, %v822
    %v824 = vmul.f32 %v821, %v823
    %v825 = vadd.f32 %v821, %v824
    %vm826 = vweird.f32 %v820
    %vm827 = vweird.f32 %v821
    %vm828 = vmor %vm826, %vm827
    %v829 = vsel %vm828, %v821, %v825
    %v830 = vand.u32 2147483647, %v820
    %vm831 = vcmp.eq.f32.partialorder %v830, 8.507059e+37
    %v832 = vand.u32 %v820, 2147483648
    %v833 = vor.u32 1.1754944e-38, %v832
    %v834 = vsel %vm831, %v833, %v829
    %v835 = vmul.f32 1.0, %v834
    %v836 = vtanh.pop %v816
    %v837 = vmul.f32 %v835, 0.0
    %839 = vrot.lane.b32.xlu0 %v836, 64
    %v840 = vpop.permute.xlu0 %839
    %v842 = vmul.f32 %v835, %v840
    %844 = vrot.lane.b32.xlu0 %v842, 32
    %v845 = vpop.permute.xlu0 %844
    %v847 = vadd.f32 %v837, %v845
    %v848 = vtanh.pop %v847
    %850 = vrot.lane.b32.xlu0 %v848, 64
    %v851 = vpop.permute.xlu0 %850
    %v853 = vmul.f32 %v835, %v851
    %v854 = vld [vmem:[%s226] sm:$0xff]
    %856 = vrot.lane.b32.xlu0 %v853, 32
    %v857 = vpop.permute.xlu0 %856
    %v858 = vsel %vm159, %v857, 0
    %860 = vmatpush.msra.mxu0 0.0
    %861 = vmatpush.msra.mxu0 0.0
    %862 = vmatpush.msra.mxu0 0.0
    %863 = vmatpush.msra.mxu0 0.0
    %864 = vmatpush.msra.mxu0 0.0
    %865 = vmatpush.msra.mxu0 0.0
    %866 = vmatpush.msra.mxu0 0.0
    %867 = vmatpush.msra.mxu0 0.0
    %868 = vmatpush.msra.mxu0 0.0
    %869 = vmatpush.msra.mxu0 0.0
    %870 = vmatpush.msra.mxu0 0.0
    %871 = vmatpush.msra.mxu0 0.0
    %872 = vmatpush.msra.mxu0 %v709
    %873 = vmatpush.msra.mxu0 %v708
    %874 = vmatpush.msra.mxu0 %v707
    %875 = vmatpush.msra.mxu0 %v706
    %876 = vmatmul.f32.gmra.mxu0 %v858
    %v877 = vpop.f32.mrf.mxu0
    %v878 = vadd.f32 0.0, %v877
    %879 = vdwg.mxu0
    %v880 = vadd.f32 %v854, %v878
    %v881 = vxor.u32 %v880, 2147483648
    %v882 = vmul.f32 %v881, 1.442695
    %v883 = vpow.pop %v882
    %v884 = vadd.f32 %v883, 1.0
    %v885 = vrcp.pop %v884
    %v886 = vmul.f32 %v884, %v885
    %v887 = vsub.f32 1.0, %v886
    %v888 = vmul.f32 %v885, %v887
    %v889 = vadd.f32 %v885, %v888
    %vm890 = vweird.f32 %v884
    %vm891 = vweird.f32 %v885
    %vm892 = vmor %vm890, %vm891
    %v893 = vsel %vm892, %v885, %v889
    %v894 = vand.u32 2147483647, %v884
    %vm895 = vcmp.eq.f32.partialorder %v894, 8.507059e+37
    %v896 = vand.u32 %v884, 2147483648
    %v897 = vor.u32 1.1754944e-38, %v896
    %v898 = vsel %vm895, %v897, %v893
    %v899 = vmul.f32 1.0, %v898
    %v900 = vtanh.pop %v880
    %v901 = vmul.f32 %v899, %v847
    %903 = vrot.lane.b32.xlu0 %v900, 64
    %v904 = vpop.permute.xlu0 %903
    %v906 = vmul.f32 %v899, %v904
    %908 = vrot.lane.b32.xlu0 %v906, 32
    %v909 = vpop.permute.xlu0 %908
    %v911 = vadd.f32 %v901, %v909
    %v912 = vtanh.pop %v911
    %914 = vrot.lane.b32.xlu0 %v912, 64
    %v915 = vpop.permute.xlu0 %914
    %v917 = vmul.f32 %v899, %v915
    %v918 = vld [vmem:[%s294] sm:$0xff]
    %920 = vrot.lane.b32.xlu0 %v917, 32
    %v921 = vpop.permute.xlu0 %920
    %v922 = vsel %vm159, %v921, 0
    %924 = vmatpush.msra.mxu0 0.0
    %925 = vmatpush.msra.mxu0 0.0
    %926 = vmatpush.msra.mxu0 0.0
    %927 = vmatpush.msra.mxu0 0.0
    %928 = vmatpush.msra.mxu0 0.0
    %929 = vmatpush.msra.mxu0 0.0
    %930 = vmatpush.msra.mxu0 0.0
    %931 = vmatpush.msra.mxu0 0.0
    %932 = vmatpush.msra.mxu0 0.0
    %933 = vmatpush.msra.mxu0 0.0
    %934 = vmatpush.msra.mxu0 0.0
    %935 = vmatpush.msra.mxu0 0.0
    %936 = vmatpush.msra.mxu0 %v709
    %937 = vmatpush.msra.mxu0 %v708
    %938 = vmatpush.msra.mxu0 %v707
    %939 = vmatpush.msra.mxu0 %v706
    %940 = vmatmul.f32.gmra.mxu0 %v922
    %v941 = vpop.f32.mrf.mxu0
    %v942 = vadd.f32 0.0, %v941
    %943 = vdwg.mxu0
    %v944 = vadd.f32 %v918, %v942
    %v945 = vxor.u32 %v944, 2147483648
    %v946 = vmul.f32 %v945, 1.442695
    %v947 = vpow.pop %v946
    %v948 = vadd.f32 %v947, 1.0
    %v949 = vrcp.pop %v948
    %v950 = vmul.f32 %v948, %v949
    %v951 = vsub.f32 1.0, %v950
    %v952 = vmul.f32 %v949, %v951
    %v953 = vadd.f32 %v949, %v952
    %vm954 = vweird.f32 %v948
    %vm955 = vweird.f32 %v949
    %vm956 = vmor %vm954, %vm955
    %v957 = vsel %vm956, %v949, %v953
    %v958 = vand.u32 2147483647, %v948
    %vm959 = vcmp.eq.f32.partialorder %v958, 8.507059e+37
    %v960 = vand.u32 %v948, 2147483648
    %v961 = vor.u32 1.1754944e-38, %v960
    %v962 = vsel %vm959, %v961, %v957
    %v963 = vmul.f32 1.0, %v962
    %v964 = vtanh.pop %v944
    %v965 = vmul.f32 %v963, %v911
    %967 = vrot.lane.b32.xlu0 %v964, 64
    %v968 = vpop.permute.xlu0 %967
    %v970 = vmul.f32 %v963, %v968
    %972 = vrot.lane.b32.xlu0 %v970, 32
    %v973 = vpop.permute.xlu0 %972
    %v975 = vadd.f32 %v965, %v973
    %v976 = vtanh.pop %v975
    %978 = vrot.lane.b32.xlu0 %v976, 64
    %v979 = vpop.permute.xlu0 %978
    %v981 = vmul.f32 %v963, %v979
    %v982 = vld [vmem:[%s362] sm:$0xff]
    %984 = vrot.lane.b32.xlu0 %v981, 32
    %v985 = vpop.permute.xlu0 %984
    %v986 = vsel %vm159, %v985, 0
    %988 = vmatpush.msra.mxu0 0.0
    %989 = vmatpush.msra.mxu0 0.0
    %990 = vmatpush.msra.mxu0 0.0
    %991 = vmatpush.msra.mxu0 0.0
    %992 = vmatpush.msra.mxu0 0.0
    %993 = vmatpush.msra.mxu0 0.0
    %994 = vmatpush.msra.mxu0 0.0
    %995 = vmatpush.msra.mxu0 0.0
    %996 = vmatpush.msra.mxu0 0.0
    %997 = vmatpush.msra.mxu0 0.0
    %998 = vmatpush.msra.mxu0 0.0
    %999 = vmatpush.msra.mxu0 0.0
    %1000 = vmatpush.msra.mxu0 %v709
    %1001 = vmatpush.msra.mxu0 %v708
    %1002 = vmatpush.msra.mxu0 %v707
    %1003 = vmatpush.msra.mxu0 %v706
    %1004 = vmatmul.f32.gmra.mxu0 %v986
    %v1005 = vpop.f32.mrf.mxu0
    %v1006 = vadd.f32 0.0, %v1005
    %1007 = vdwg.mxu0
    %v1008 = vadd.f32 %v982, %v1006
    %v1009 = vxor.u32 %v1008, 2147483648
    %v1010 = vmul.f32 %v1009, 1.442695
    %v1011 = vpow.pop %v1010
    %v1012 = vadd.f32 %v1011, 1.0
    %v1013 = vrcp.pop %v1012
    %v1014 = vmul.f32 %v1012, %v1013
    %v1015 = vsub.f32 1.0, %v1014
    %v1016 = vmul.f32 %v1013, %v1015
    %v1017 = vadd.f32 %v1013, %v1016
    %vm1018 = vweird.f32 %v1012
    %vm1019 = vweird.f32 %v1013
    %vm1020 = vmor %vm1018, %vm1019
    %v1021 = vsel %vm1020, %v1013, %v1017
    %v1022 = vand.u32 2147483647, %v1012
    %vm1023 = vcmp.eq.f32.partialorder %v1022, 8.507059e+37
    %v1024 = vand.u32 %v1012, 2147483648
    %v1025 = vor.u32 1.1754944e-38, %v1024
    %v1026 = vsel %vm1023, %v1025, %v1021
    %v1027 = vmul.f32 1.0, %v1026
    %v1028 = vtanh.pop %v1008
    %v1029 = vmul.f32 %v1027, %v975
    %1031 = vrot.lane.b32.xlu0 %v1028, 64
    %v1032 = vpop.permute.xlu0 %1031
    %v1034 = vmul.f32 %v1027, %v1032
    %1036 = vrot.lane.b32.xlu0 %v1034, 32
    %v1037 = vpop.permute.xlu0 %1036
    %v1039 = vadd.f32 %v1029, %v1037
    %v1040 = vtanh.pop %v1039
    %1042 = vrot.lane.b32.xlu0 %v1040, 64
    %v1043 = vpop.permute.xlu0 %1042
    %v1045 = vmul.f32 %v1027, %v1043
    %v1046 = vld [vmem:[%s430] sm:$0xff]
    %1048 = vrot.lane.b32.xlu0 %v1045, 32
    %v1049 = vpop.permute.xlu0 %1048
    %v1050 = vsel %vm159, %v1049, 0
    %1052 = vmatpush.msra.mxu0 0.0
    %1053 = vmatpush.msra.mxu0 0.0
    %1054 = vmatpush.msra.mxu0 0.0
    %1055 = vmatpush.msra.mxu0 0.0
    %1056 = vmatpush.msra.mxu0 0.0
    %1057 = vmatpush.msra.mxu0 0.0
    %1058 = vmatpush.msra.mxu0 0.0
    %1059 = vmatpush.msra.mxu0 0.0
    %1060 = vmatpush.msra.mxu0 0.0
    %1061 = vmatpush.msra.mxu0 0.0
    %1062 = vmatpush.msra.mxu0 0.0
    %1063 = vmatpush.msra.mxu0 0.0
    %1064 = vmatpush.msra.mxu0 %v709
    %1065 = vmatpush.msra.mxu0 %v708
    %1066 = vmatpush.msra.mxu0 %v707
    %1067 = vmatpush.msra.mxu0 %v706
    %1068 = vmatmul.f32.gmra.mxu0 %v1050
    %v1069 = vpop.f32.mrf.mxu0
    %v1070 = vadd.f32 0.0, %v1069
    %1071 = vdwg.mxu0
    %v1072 = vadd.f32 %v1046, %v1070
    %v1073 = vxor.u32 %v1072, 2147483648
    %v1074 = vmul.f32 %v1073, 1.442695
    %v1075 = vpow.pop %v1074
    %v1076 = vadd.f32 %v1075, 1.0
    %v1077 = vrcp.pop %v1076
    %v1078 = vmul.f32 %v1076, %v1077
    %v1079 = vsub.f32 1.0, %v1078
    %v1080 = vmul.f32 %v1077, %v1079
    %v1081 = vadd.f32 %v1077, %v1080
    %vm1082 = vweird.f32 %v1076
    %vm1083 = vweird.f32 %v1077
    %vm1084 = vmor %vm1082, %vm1083
    %v1085 = vsel %vm1084, %v1077, %v1081
    %v1086 = vand.u32 2147483647, %v1076
    %vm1087 = vcmp.eq.f32.partialorder %v1086, 8.507059e+37
    %v1088 = vand.u32 %v1076, 2147483648
    %v1089 = vor.u32 1.1754944e-38, %v1088
    %v1090 = vsel %vm1087, %v1089, %v1085
    %v1091 = vmul.f32 1.0, %v1090
    %v1092 = vtanh.pop %v1072
    %v1093 = vmul.f32 %v1091, %v1039
    %1095 = vrot.lane.b32.xlu0 %v1092, 64
    %v1096 = vpop.permute.xlu0 %1095
    %v1098 = vmul.f32 %v1091, %v1096
    %1100 = vrot.lane.b32.xlu0 %v1098, 32
    %v1101 = vpop.permute.xlu0 %1100
    %v1103 = vadd.f32 %v1093, %v1101
    %v1104 = vtanh.pop %v1103
    %1106 = vrot.lane.b32.xlu0 %v1104, 64
    %v1107 = vpop.permute.xlu0 %1106
    %v1109 = vmul.f32 %v1091, %v1107
    %v1110 = vld [vmem:[%s498] sm:$0xff]
    %1112 = vrot.lane.b32.xlu0 %v1109, 32
    %v1113 = vpop.permute.xlu0 %1112
    %v1114 = vsel %vm159, %v1113, 0
    %1116 = vmatpush.msra.mxu0 0.0
    %1117 = vmatpush.msra.mxu0 0.0
    %1118 = vmatpush.msra.mxu0 0.0
    %1119 = vmatpush.msra.mxu0 0.0
    %1120 = vmatpush.msra.mxu0 0.0
    %1121 = vmatpush.msra.mxu0 0.0
    %1122 = vmatpush.msra.mxu0 0.0
    %1123 = vmatpush.msra.mxu0 0.0
    %1124 = vmatpush.msra.mxu0 0.0
    %1125 = vmatpush.msra.mxu0 0.0
    %1126 = vmatpush.msra.mxu0 0.0
    %1127 = vmatpush.msra.mxu0 0.0
    %1128 = vmatpush.msra.mxu0 %v709
    %1129 = vmatpush.msra.mxu0 %v708
    %1130 = vmatpush.msra.mxu0 %v707
    %1131 = vmatpush.msra.mxu0 %v706
    %1132 = vmatmul.f32.gmra.mxu0 %v1114
    %v1133 = vpop.f32.mrf.mxu0
    %v1134 = vadd.f32 0.0, %v1133
    %1135 = vdwg.mxu0
    %v1136 = vadd.f32 %v1110, %v1134
    %v1137 = vxor.u32 %v1136, 2147483648
    %v1138 = vmul.f32 %v1137, 1.442695
    %v1139 = vpow.pop %v1138
    %v1140 = vadd.f32 %v1139, 1.0
    %v1141 = vrcp.pop %v1140
    %v1142 = vmul.f32 %v1140, %v1141
    %v1143 = vsub.f32 1.0, %v1142
    %v1144 = vmul.f32 %v1141, %v1143
    %v1145 = vadd.f32 %v1141, %v1144
    %vm1146 = vweird.f32 %v1140
    %vm1147 = vweird.f32 %v1141
    %vm1148 = vmor %vm1146, %vm1147
    %v1149 = vsel %vm1148, %v1141, %v1145
    %v1150 = vand.u32 2147483647, %v1140
    %vm1151 = vcmp.eq.f32.partialorder %v1150, 8.507059e+37
    %v1152 = vand.u32 %v1140, 2147483648
    %v1153 = vor.u32 1.1754944e-38, %v1152
    %v1154 = vsel %vm1151, %v1153, %v1149
    %v1155 = vmul.f32 1.0, %v1154
    %v1156 = vtanh.pop %v1136
    %v1157 = vmul.f32 %v1155, %v1103
    %1159 = vrot.lane.b32.xlu0 %v1156, 64
    %v1160 = vpop.permute.xlu0 %1159
    %v1162 = vmul.f32 %v1155, %v1160
    %1164 = vrot.lane.b32.xlu0 %v1162, 32
    %v1165 = vpop.permute.xlu0 %1164
    %v1167 = vadd.f32 %v1157, %v1165
    %v1168 = vtanh.pop %v1167
    %1170 = vrot.lane.b32.xlu0 %v1168, 64
    %v1171 = vpop.permute.xlu0 %1170
    %v1173 = vmul.f32 %v1155, %v1171
    %v1174 = vld [vmem:[%s566] sm:$0xff]
    %1176 = vrot.lane.b32.xlu0 %v1173, 32
    %v1177 = vpop.permute.xlu0 %1176
    %v1178 = vsel %vm159, %v1177, 0
    %1180 = vmatpush.msra.mxu0 0.0
    %1181 = vmatpush.msra.mxu0 0.0
    %1182 = vmatpush.msra.mxu0 0.0
    %1183 = vmatpush.msra.mxu0 0.0
    %1184 = vmatpush.msra.mxu0 0.0
    %1185 = vmatpush.msra.mxu0 0.0
    %1186 = vmatpush.msra.mxu0 0.0
    %1187 = vmatpush.msra.mxu0 0.0
    %1188 = vmatpush.msra.mxu0 0.0
    %1189 = vmatpush.msra.mxu0 0.0
    %1190 = vmatpush.msra.mxu0 0.0
    %1191 = vmatpush.msra.mxu0 0.0
    %1192 = vmatpush.msra.mxu0 %v709
    %1193 = vmatpush.msra.mxu0 %v708
    %1194 = vmatpush.msra.mxu0 %v707
    %1195 = vmatpush.msra.mxu0 %v706
    %1196 = vmatmul.f32.gmra.mxu0 %v1178
    %v1197 = vpop.f32.mrf.mxu0
    %v1198 = vadd.f32 0.0, %v1197
    %1199 = vdwg.mxu0
    %v1200 = vadd.f32 %v1174, %v1198
    %v1201 = vxor.u32 %v1200, 2147483648
    %v1202 = vmul.f32 %v1201, 1.442695
    %v1203 = vpow.pop %v1202
    %v1204 = vadd.f32 %v1203, 1.0
    %v1205 = vrcp.pop %v1204
    %v1206 = vmul.f32 %v1204, %v1205
    %v1207 = vsub.f32 1.0, %v1206
    %v1208 = vmul.f32 %v1205, %v1207
    %v1209 = vadd.f32 %v1205, %v1208
    %vm1210 = vweird.f32 %v1204
    %vm1211 = vweird.f32 %v1205
    %vm1212 = vmor %vm1210, %vm1211
    %v1213 = vsel %vm1212, %v1205, %v1209
    %v1214 = vand.u32 2147483647, %v1204
    %vm1215 = vcmp.eq.f32.partialorder %v1214, 8.507059e+37
    %v1216 = vand.u32 %v1204, 2147483648
    %v1217 = vor.u32 1.1754944e-38, %v1216
    %v1218 = vsel %vm1215, %v1217, %v1213
    %v1219 = vmul.f32 1.0, %v1218
    %v1220 = vtanh.pop %v1200
    %v1221 = vmul.f32 %v1219, %v1167
    %1223 = vrot.lane.b32.xlu0 %v1220, 64
    %v1224 = vpop.permute.xlu0 %1223
    %v1226 = vmul.f32 %v1219, %v1224
    %1228 = vrot.lane.b32.xlu0 %v1226, 32
    %v1229 = vpop.permute.xlu0 %1228
    %v1231 = vadd.f32 %v1221, %v1229
    %v1232 = vtanh.pop %v1231
    %1234 = vrot.lane.b32.xlu0 %v1232, 64
    %v1235 = vpop.permute.xlu0 %1234
    %v1237 = vmul.f32 %v1219, %v1235
    %v1238 = vld [vmem:[%s634] sm:$0xff]
    %1240 = vrot.lane.b32.xlu0 %v1237, 32
    %v1241 = vpop.permute.xlu0 %1240
    %v1242 = vsel %vm159, %v1241, 0
    %1244 = vmatpush.msra.mxu0 0.0
    %1245 = vmatpush.msra.mxu0 0.0
    %1246 = vmatpush.msra.mxu0 0.0
    %1247 = vmatpush.msra.mxu0 0.0
    %1248 = vmatpush.msra.mxu0 0.0
    %1249 = vmatpush.msra.mxu0 0.0
    %1250 = vmatpush.msra.mxu0 0.0
    %1251 = vmatpush.msra.mxu0 0.0
    %1252 = vmatpush.msra.mxu0 0.0
    %1253 = vmatpush.msra.mxu0 0.0
    %1254 = vmatpush.msra.mxu0 0.0
    %1255 = vmatpush.msra.mxu0 0.0
    %1256 = vmatpush.msra.mxu0 %v709
    %1257 = vmatpush.msra.mxu0 %v708
    %1258 = vmatpush.msra.mxu0 %v707
    %1259 = vmatpush.msra.mxu0 %v706
    %1260 = vmatmul.f32.gmra.mxu0 %v1242
    %v1261 = vpop.f32.mrf.mxu0
    %v1262 = vadd.f32 0.0, %v1261
    %1263 = vdwg.mxu0
    %v1264 = vadd.f32 %v1238, %v1262
    %v1265 = vxor.u32 %v1264, 2147483648
    %v1266 = vmul.f32 %v1265, 1.442695
    %v1267 = vpow.pop %v1266
    %v1268 = vadd.f32 %v1267, 1.0
    %v1269 = vrcp.pop %v1268
    %v1270 = vmul.f32 %v1268, %v1269
    %v1271 = vsub.f32 1.0, %v1270
    %v1272 = vmul.f32 %v1269, %v1271
    %v1273 = vadd.f32 %v1269, %v1272
    %vm1274 = vweird.f32 %v1268
    %vm1275 = vweird.f32 %v1269
    %vm1276 = vmor %vm1274, %vm1275
    %v1277 = vsel %vm1276, %v1269, %v1273
    %v1278 = vand.u32 2147483647, %v1268
    %vm1279 = vcmp.eq.f32.partialorder %v1278, 8.507059e+37
    %v1280 = vand.u32 %v1268, 2147483648
    %v1281 = vor.u32 1.1754944e-38, %v1280
    %v1282 = vsel %vm1279, %v1281, %v1277
    %v1283 = vmul.f32 1.0, %v1282
    %v1284 = vtanh.pop %v1264
    %v1285 = vmul.f32 %v1283, %v1231
    %1287 = vrot.lane.b32.xlu0 %v1284, 64
    %v1288 = vpop.permute.xlu0 %1287
    %v1290 = vmul.f32 %v1283, %v1288
    %1292 = vrot.lane.b32.xlu0 %v1290, 32
    %v1293 = vpop.permute.xlu0 %1292
    %v1295 = vadd.f32 %v1285, %v1293
    %v1296 = vtanh.pop %v1295
    %1298 = vrot.lane.b32.xlu0 %v1296, 64
    %v1299 = vpop.permute.xlu0 %1298
    %v1301 = vmul.f32 %v1283, %v1299
    %v1302 = vld [vmem:[#allocation7] sm:$0xff]
    %v1303 = vld [vmem:[#allocation7 + $0x8] sm:$0xff]
    %v1304 = vld [vmem:[#allocation7 + $0x10] sm:$0xff]
    %v1305 = vld [vmem:[#allocation7 + $0x18] sm:$0xff]
    %v1306 = vld [vmem:[%s8] sm:$0x1]
    %v1308 = vperm.slane %v1306, 0
    %1311 = vrot.lane.b32.xlu0 %v1301, 32
    %v1312 = vpop.permute.xlu0 %1311
    %v1313 = vsel %vm159, %v1312, 0
    %1315 = vmatpush.msra.mxu0 0.0
    %1316 = vmatpush.msra.mxu0 0.0
    %1317 = vmatpush.msra.mxu0 0.0
    %1318 = vmatpush.msra.mxu0 0.0
    %1319 = vmatpush.msra.mxu0 0.0
    %1320 = vmatpush.msra.mxu0 0.0
    %1321 = vmatpush.msra.mxu0 0.0
    %1322 = vmatpush.msra.mxu0 0.0
    %1323 = vmatpush.msra.mxu0 0.0
    %1324 = vmatpush.msra.mxu0 0.0
    %1325 = vmatpush.msra.mxu0 0.0
    %1326 = vmatpush.msra.mxu0 0.0
    %1327 = vmatpush.msra.mxu0 %v1305
    %1328 = vmatpush.msra.mxu0 %v1304
    %1329 = vmatpush.msra.mxu0 %v1303
    %1330 = vmatpush.msra.mxu0 %v1302
    %1331 = vmatmul.f32.gmra.mxu0 %v1313
    %v1332 = vpop.f32.mrf.mxu0
    %v1333 = vadd.f32 %v1308, %v1332
    %1334 = vdwg.mxu0
    %1335 = vst [vmem:[#allocation9] sm:$0xff] %v1333
    // Predicated region
    $region46: #{tpu_custom_call.1} parent=1 // pred_check
      _
    $region47: #{tpu_custom_call.1} parent=1 // pred_check_branch
      %1337 = sbr.rel (0) target = $region49
    $region48: #{tpu_custom_call.1} parent=1 // pred_region
      %1339 = vsyncadd [#allocation6], 0
      %s1341 = sshll.u32 [#allocation9], 4
      %s1342 = int_to_ptr.vmem [resolvable:$true] %s1341
      %s1343 = sshll.u32 %s9, 4
      %s1344 = int_to_ptr.hbm [resolvable:$true] %s1343
      %1346 = dma.vmem_to_hbm [thread:$0]  %s1342, 128, %s1344, [#allocation6]
    $region49: #{tpu_custom_call.1} parent=1 // pred_fallthru
      _
    // Predicated region
    $region50: #{tpu_custom_call.1} parent=1 // pred_check
      _
    $region51: #{tpu_custom_call.1} parent=1 // pred_check_branch
      %1348 = sbr.rel (0) target = $region53
    $region52: #{tpu_custom_call.1} parent=1 // pred_region
      %1350 = dma.done [#allocation6], 128
    $region53: #{tpu_custom_call.1} parent=1 // pred_fallthru
      _
    %1351 = vsyncpa [#allocation5], 1
    %1352 = vsyncpa [#allocation8], 1
    %1353 = vsyncpa [#allocation6], 1

</llo_original>
